<compile_context>
chip_gen: v5e
topology: v5e:2x2
jax: 0.10.0
libtpu: 0.0.40
codegen_flags: <defaults>
</compile_context>

<pallas_src>
import math

import jax
import jax.numpy as jnp
from jax.experimental import pallas as pl
from jax.experimental.pallas import tpu as pltpu

NHEAD = 4
NLAYERS = 2
DIM_FF = 512
LN_EPS = 1e-5


def vit_kernel(x_ref, wqkv_ref, bqkv_ref, wo_ref, w1_ref, b1_ref, w2_ref,
               vecs_ref, out_ref):
    """Both post-norm TransformerEncoderLayers for one batch element."""
    x = x_ref[0]                                  # (S, D) f32
    S, D = x.shape
    Dh = D // NHEAD

    def layer_norm(z, g, b):
        mu = jnp.mean(z, axis=-1, keepdims=True)
        zc = z - mu
        var = jnp.mean(zc * zc, axis=-1, keepdims=True)
        return zc * jax.lax.rsqrt(var + LN_EPS) * g + b

    for l in range(NLAYERS):                      # static unroll over layers
        # ---- fused QKV projection: one (S,D)@(D,3D) MXU op per layer.
        # 1/sqrt(Dh) is already folded into the Q columns (pack_params).
        x_bf = x.astype(jnp.bfloat16)
        qkv = jnp.dot(x_bf, wqkv_ref[l],
                      preferred_element_type=jnp.float32) + bqkv_ref[l]  # (S,3D)

        heads = []
        for h in range(NHEAD):                    # static unroll over heads
            q = qkv[:, h * Dh:(h + 1) * Dh]                       # pre-scaled
            k = qkv[:, D + h * Dh: D + (h + 1) * Dh]
            v = qkv[:, 2 * D + h * Dh: 2 * D + (h + 1) * Dh]
            # scores: contract the Dh axis of q and k (no explicit transpose)
            s = jax.lax.dot_general(
                q, k,
                dimension_numbers=(((1,), (1,)), ((), ())),
                preferred_element_type=jnp.float32)               # (S, S)
            s = s - jnp.max(s, axis=-1, keepdims=True)
            p = jnp.exp(s)
            p = p * pl.reciprocal(jnp.sum(p, axis=-1, keepdims=True),
                                  approx=True)
            heads.append(jnp.dot(p, v, preferred_element_type=jnp.float32))
        o = jnp.concatenate(heads, axis=-1)                       # (S, D)

        # single output projection (S,D)@(D,D) + bias
        attn = jnp.dot(o, wo_ref[l],
                       preferred_element_type=jnp.float32) + vecs_ref[l, 0]

        # post-norm: y = LN1(x + attn)
        y = layer_norm(x + attn, vecs_ref[l, 1], vecs_ref[l, 2])

        # ---- feed-forward: linear(512) -> relu -> linear(D) ----
        h1 = jnp.dot(y.astype(jnp.bfloat16), w1_ref[l],
                     preferred_element_type=jnp.float32) + b1_ref[l]
        h1 = jnp.maximum(h1, 0.0)
        z = jnp.dot(h1.astype(jnp.bfloat16), w2_ref[l],
                    preferred_element_type=jnp.float32) + vecs_ref[l, 3]

        # post-norm: x = LN2(y + ffn)
        x = layer_norm(y + z, vecs_ref[l, 4], vecs_ref[l, 5])

    out_ref[0, :, :] = x.astype(out_ref.dtype)


def _const_spec(arr):
    n = arr.ndim
    return pl.BlockSpec(arr.shape, lambda b, _n=n: (0,) * _n)


@jax.jit
def vit_forward(x, packed):
    B, S, D = x.shape
    ws = [packed["wqkv"], packed["bqkv"], packed["wo"], packed["w1"],
          packed["b1"], packed["w2"], packed["vecs"]]
    return pl.pallas_call(
        vit_kernel,
        out_shape=jax.ShapeDtypeStruct((B, S, D), x.dtype),
        grid=(B,),
        in_specs=[pl.BlockSpec((1, S, D), lambda b: (b, 0, 0))]
                 + [_const_spec(w) for w in ws],
        out_specs=pl.BlockSpec((1, S, D), lambda b: (b, 0, 0)),
        compiler_params=pltpu.CompilerParams(dimension_semantics=("parallel",)),
    )(x, *ws)


def init_layer_params(key, d_model, dim_ff=DIM_FF):
    """Deterministic synthetic params for one TransformerEncoderLayer.

    Stored already transposed for `x @ W`:
      w_in: (D, 3D) (PyTorch in_proj_weight is (3D, D)); w_o: (D, D);
      w1: (D, 512); w2: (512, D).
    """
    ks = jax.random.split(key, 8)
    s = 0.05
    return {
        "w_in": s * jax.random.normal(ks[0], (d_model, 3 * d_model), jnp.float32),
        "b_in": s * jax.random.normal(ks[1], (3 * d_model,), jnp.float32),
        "w_o":  s * jax.random.normal(ks[2], (d_model, d_model), jnp.float32),
        "b_o":  s * jax.random.normal(ks[3], (d_model,), jnp.float32),
        "g1":   jnp.ones((d_model,), jnp.float32),
        "be1":  jnp.zeros((d_model,), jnp.float32),
        "w1":   s * jax.random.normal(ks[4], (d_model, dim_ff), jnp.float32),
        "b1":   s * jax.random.normal(ks[5], (dim_ff,), jnp.float32),
        "w2":   s * jax.random.normal(ks[6], (dim_ff, d_model), jnp.float32),
        "b2":   s * jax.random.normal(ks[7], (d_model,), jnp.float32),
        "g2":   jnp.ones((d_model,), jnp.float32),
        "be2":  jnp.zeros((d_model,), jnp.float32),
    }


def pack_params(layers):
    """Stack both layers; fold the attention scale into Q weights; pre-cast
    the large matmul weights to bf16 (one-time host-side transform)."""
    D = layers[0]["w_o"].shape[0]
    Dh = D // NHEAD
    scale = 1.0 / math.sqrt(Dh)

    def scaled_w_in(p):
        w = p["w_in"]                                         # (D, 3D)
        return jnp.concatenate([w[:, :D] * scale, w[:, D:]], axis=1)

    def scaled_b_in(p):
        b = p["b_in"]                                         # (3D,)
        return jnp.concatenate([b[:D] * scale, b[D:]])

    wqkv = jnp.stack([scaled_w_in(p) for p in layers])        # (L, D, 3D)
    bqkv = jnp.stack([scaled_b_in(p) for p in layers])        # (L, 3D)
    wo = jnp.stack([p["w_o"] for p in layers])                # (L, D, D)
    w1 = jnp.stack([p["w1"] for p in layers])                 # (L, D, F)
    b1 = jnp.stack([p["b1"] for p in layers])                 # (L, F)
    w2 = jnp.stack([p["w2"] for p in layers])                 # (L, F, D)
    vecs = jnp.stack([jnp.stack([p["b_o"], p["g1"], p["be1"],
                                 p["b2"], p["g2"], p["be2"]])
                      for p in layers])                       # (L, 6, D)
    return {
        "wqkv": wqkv.astype(jnp.bfloat16),
        "bqkv": bqkv.astype(jnp.float32),
        "wo":   wo.astype(jnp.float32),
        "w1":   w1.astype(jnp.bfloat16),
        "b1":   b1.astype(jnp.float32),
        "w2":   w2.astype(jnp.bfloat16),
        "vecs": vecs.astype(jnp.float32),
    }


# ---- pure-JAX reference (PyTorch eval-mode semantics) for a sanity check ----
def _encoder_layer_reference(x, p):
    B, S, D = x.shape
    Dh = D // NHEAD
    qkv = x @ p["w_in"] + p["b_in"]
    q, k, v = jnp.split(qkv, 3, axis=-1)

    def heads(t):
        return t.reshape(B, S, NHEAD, Dh).transpose(0, 2, 1, 3)

    q, k, v = heads(q), heads(k), heads(v)
    s = jnp.einsum("bhqd,bhkd->bhqk", q, k) / math.sqrt(Dh)
    a = jax.nn.softmax(s, axis=-1)
    o = jnp.einsum("bhqk,bhkd->bhqd", a, v)
    o = o.transpose(0, 2, 1, 3).reshape(B, S, D)
    attn = o @ p["w_o"] + p["b_o"]

    def ln(z, g, b):
        mu = z.mean(-1, keepdims=True)
        var = ((z - mu) ** 2).mean(-1, keepdims=True)
        return (z - mu) * jax.lax.rsqrt(var + LN_EPS) * g + b

    y = ln(x + attn, p["g1"], p["be1"])
    h = jax.nn.relu(y @ p["w1"] + p["b1"])
    z = h @ p["w2"] + p["b2"]
    return ln(y + z, p["g2"], p["be2"])


def vit_reference(x, layer_params):
    for p in layer_params:
        x = _encoder_layer_reference(x, p)
    return x


if __name__ == "__main__":
    key = jax.random.PRNGKey(0)
    k_x, k_l0, k_l1 = jax.random.split(key, 3)

    B, S, D = 2, 8, 32            # latentVecSize = 32 (divisible by nhead=4)
    x = jax.random.normal(k_x, (B, S, D), jnp.float32)

    params0 = init_layer_params(k_l0, D)
    params1 = init_layer_params(k_l1, D)
    packed = pack_params([params0, params1])

    out = vit_forward(x, packed)
    jax.block_until_ready(out)
    assert out.shape == (B, S, D)

    ref = vit_reference(x, [params0, params1])
    err = float(jnp.max(jnp.abs(out - ref)))
    assert err < 2e-1, f"kernel/reference mismatch: max abs err {err}"

    print("KERNEL_OK")
</pallas_src>

<mosaic_0001>
module attributes {stable_mosaic.version = 11 : i64} {
  func.func @vit_kernel(%arg0: i32, %arg1: memref<1x8x32xf32, #tpu.memory_space<vmem>>, %arg2: memref<2x32x96xbf16, #tpu.memory_space<vmem>>, %arg3: memref<2x96xf32, #tpu.memory_space<vmem>>, %arg4: memref<2x32x32xf32, #tpu.memory_space<vmem>>, %arg5: memref<2x32x512xbf16, #tpu.memory_space<vmem>>, %arg6: memref<2x512xf32, #tpu.memory_space<vmem>>, %arg7: memref<2x512x32xbf16, #tpu.memory_space<vmem>>, %arg8: memref<2x6x32xf32, #tpu.memory_space<vmem>>, %arg9: memref<1x8x32xf32, #tpu.memory_space<vmem>>) attributes {dimension_semantics = [#tpu.dimension_semantics<parallel>], iteration_bounds = array<i64: 2>, scalar_prefetch = 0 : i64, scratch_operands = 0 : i64, tpu.core_type = #tpu.core_type<tc>, window_params = [{transform_indices = @transform_0, window_bounds = array<i64: 1, 8, 32>}, {pipeline_mode = #tpu.pipeline_mode<synchronous>, transform_indices = @transform_1, window_bounds = array<i64: 2, 32, 96>}, {pipeline_mode = #tpu.pipeline_mode<synchronous>, transform_indices = @transform_2, window_bounds = array<i64: 2, 96>}, {pipeline_mode = #tpu.pipeline_mode<synchronous>, transform_indices = @transform_3, window_bounds = array<i64: 2, 32, 32>}, {pipeline_mode = #tpu.pipeline_mode<synchronous>, transform_indices = @transform_4, window_bounds = array<i64: 2, 32, 512>}, {pipeline_mode = #tpu.pipeline_mode<synchronous>, transform_indices = @transform_5, window_bounds = array<i64: 2, 512>}, {pipeline_mode = #tpu.pipeline_mode<synchronous>, transform_indices = @transform_6, window_bounds = array<i64: 2, 512, 32>}, {pipeline_mode = #tpu.pipeline_mode<synchronous>, transform_indices = @transform_7, window_bounds = array<i64: 2, 6, 32>}, {transform_indices = @transform_8, window_bounds = array<i64: 1, 8, 32>}]} {
    %c0 = arith.constant 0 : index
    %c0_0 = arith.constant 0 : index
    %c0_1 = arith.constant 0 : index
    %0 = vector.load %arg1[%c0, %c0_0, %c0_1] : memref<1x8x32xf32, #tpu.memory_space<vmem>>, vector<1x8x32xf32>
    %1 = vector.shape_cast %0 : vector<1x8x32xf32> to vector<8x32xf32>
    %2 = arith.truncf %1 : vector<8x32xf32> to vector<8x32xbf16>
    %c0_2 = arith.constant 0 : index
    %c0_3 = arith.constant 0 : index
    %c0_4 = arith.constant 0 : index
    %3 = vector.load %arg2[%c0_2, %c0_3, %c0_4] : memref<2x32x96xbf16, #tpu.memory_space<vmem>>, vector<1x32x96xbf16>
    %4 = vector.shape_cast %3 : vector<1x32x96xbf16> to vector<32x96xbf16>
    %cst = arith.constant dense<0.000000e+00> : vector<8x96xf32>
    %5 = tpu.matmul %2, %4, %cst {dimension_numbers = #tpu.dot_dimension_numbers<[1], [0], [0], [1], [0, 0, 1, 1], [], []>} : vector<8x32xbf16>, vector<32x96xbf16>, vector<8x96xf32> -> vector<8x96xf32>
    %c0_5 = arith.constant 0 : index
    %c0_6 = arith.constant 0 : index
    %6 = vector.load %arg3[%c0_5, %c0_6] : memref<2x96xf32, #tpu.memory_space<vmem>>, vector<1x96xf32>
    %7 = vector.shape_cast %6 : vector<1x96xf32> to vector<96xf32>
    %8 = vector.shape_cast %7 : vector<96xf32> to vector<1x96xf32>
    %9 = vector.broadcast %8 : vector<1x96xf32> to vector<8x96xf32>
    %10 = arith.addf %5, %9 : vector<8x96xf32>
    %11 = vector.extract_strided_slice %10 {offsets = [0, 0], sizes = [8, 8], strides = [1, 1]} : vector<8x96xf32> to vector<8x8xf32>
    %12 = vector.extract_strided_slice %10 {offsets = [0, 32], sizes = [8, 8], strides = [1, 1]} : vector<8x96xf32> to vector<8x8xf32>
    %13 = vector.extract_strided_slice %10 {offsets = [0, 64], sizes = [8, 8], strides = [1, 1]} : vector<8x96xf32> to vector<8x8xf32>
    %cst_7 = arith.constant dense<0.000000e+00> : vector<8x8xf32>
    %14 = tpu.matmul %11, %12, %cst_7 {dimension_numbers = #tpu.dot_dimension_numbers<[1], [1], [0], [0], [0, 0, 1, 0], [], []>} : vector<8x8xf32>, vector<8x8xf32>, vector<8x8xf32> -> vector<8x8xf32>
    %cst_8 = arith.constant dense<0xFF800000> : vector<8xf32>
    %15 = vector.multi_reduction <maximumf>, %14, %cst_8 [1] : vector<8x8xf32> to vector<8xf32>
    %16 = vector.shape_cast %15 : vector<8xf32> to vector<8x1xf32>
    %17 = vector.broadcast %16 : vector<8x1xf32> to vector<8x8xf32>
    %18 = arith.subf %14, %17 : vector<8x8xf32>
    %19 = math.exp %18 : vector<8x8xf32>
    %cst_9 = arith.constant dense<0.000000e+00> : vector<8xf32>
    %20 = vector.multi_reduction <add>, %19, %cst_9 [1] : vector<8x8xf32> to vector<8xf32>
    %21 = vector.shape_cast %20 : vector<8xf32> to vector<8x1xf32>
    %22 = tpu.reciprocal %21 {approx = true} : vector<8x1xf32> -> vector<8x1xf32>
    %23 = vector.broadcast %22 : vector<8x1xf32> to vector<8x8xf32>
    %24 = arith.mulf %19, %23 : vector<8x8xf32>
    %cst_10 = arith.constant dense<0.000000e+00> : vector<8x8xf32>
    %25 = tpu.matmul %24, %13, %cst_10 {dimension_numbers = #tpu.dot_dimension_numbers<[1], [0], [0], [1], [0, 0, 1, 1], [], []>} : vector<8x8xf32>, vector<8x8xf32>, vector<8x8xf32> -> vector<8x8xf32>
    %26 = vector.extract_strided_slice %10 {offsets = [0, 8], sizes = [8, 8], strides = [1, 1]} : vector<8x96xf32> to vector<8x8xf32>
    %27 = vector.extract_strided_slice %10 {offsets = [0, 40], sizes = [8, 8], strides = [1, 1]} : vector<8x96xf32> to vector<8x8xf32>
    %28 = vector.extract_strided_slice %10 {offsets = [0, 72], sizes = [8, 8], strides = [1, 1]} : vector<8x96xf32> to vector<8x8xf32>
    %cst_11 = arith.constant dense<0.000000e+00> : vector<8x8xf32>
    %29 = tpu.matmul %26, %27, %cst_11 {dimension_numbers = #tpu.dot_dimension_numbers<[1], [1], [0], [0], [0, 0, 1, 0], [], []>} : vector<8x8xf32>, vector<8x8xf32>, vector<8x8xf32> -> vector<8x8xf32>
    %cst_12 = arith.constant dense<0xFF800000> : vector<8xf32>
    %30 = vector.multi_reduction <maximumf>, %29, %cst_12 [1] : vector<8x8xf32> to vector<8xf32>
    %31 = vector.shape_cast %30 : vector<8xf32> to vector<8x1xf32>
    %32 = vector.broadcast %31 : vector<8x1xf32> to vector<8x8xf32>
    %33 = arith.subf %29, %32 : vector<8x8xf32>
    %34 = math.exp %33 : vector<8x8xf32>
    %cst_13 = arith.constant dense<0.000000e+00> : vector<8xf32>
    %35 = vector.multi_reduction <add>, %34, %cst_13 [1] : vector<8x8xf32> to vector<8xf32>
    %36 = vector.shape_cast %35 : vector<8xf32> to vector<8x1xf32>
    %37 = tpu.reciprocal %36 {approx = true} : vector<8x1xf32> -> vector<8x1xf32>
    %38 = vector.broadcast %37 : vector<8x1xf32> to vector<8x8xf32>
    %39 = arith.mulf %34, %38 : vector<8x8xf32>
    %cst_14 = arith.constant dense<0.000000e+00> : vector<8x8xf32>
    %40 = tpu.matmul %39, %28, %cst_14 {dimension_numbers = #tpu.dot_dimension_numbers<[1], [0], [0], [1], [0, 0, 1, 1], [], []>} : vector<8x8xf32>, vector<8x8xf32>, vector<8x8xf32> -> vector<8x8xf32>
    %41 = vector.extract_strided_slice %10 {offsets = [0, 16], sizes = [8, 8], strides = [1, 1]} : vector<8x96xf32> to vector<8x8xf32>
    %42 = vector.extract_strided_slice %10 {offsets = [0, 48], sizes = [8, 8], strides = [1, 1]} : vector<8x96xf32> to vector<8x8xf32>
    %43 = vector.extract_strided_slice %10 {offsets = [0, 80], sizes = [8, 8], strides = [1, 1]} : vector<8x96xf32> to vector<8x8xf32>
    %cst_15 = arith.constant dense<0.000000e+00> : vector<8x8xf32>
    %44 = tpu.matmul %41, %42, %cst_15 {dimension_numbers = #tpu.dot_dimension_numbers<[1], [1], [0], [0], [0, 0, 1, 0], [], []>} : vector<8x8xf32>, vector<8x8xf32>, vector<8x8xf32> -> vector<8x8xf32>
    %cst_16 = arith.constant dense<0xFF800000> : vector<8xf32>
    %45 = vector.multi_reduction <maximumf>, %44, %cst_16 [1] : vector<8x8xf32> to vector<8xf32>
    %46 = vector.shape_cast %45 : vector<8xf32> to vector<8x1xf32>
    %47 = vector.broadcast %46 : vector<8x1xf32> to vector<8x8xf32>
    %48 = arith.subf %44, %47 : vector<8x8xf32>
    %49 = math.exp %48 : vector<8x8xf32>
    %cst_17 = arith.constant dense<0.000000e+00> : vector<8xf32>
    %50 = vector.multi_reduction <add>, %49, %cst_17 [1] : vector<8x8xf32> to vector<8xf32>
    %51 = vector.shape_cast %50 : vector<8xf32> to vector<8x1xf32>
    %52 = tpu.reciprocal %51 {approx = true} : vector<8x1xf32> -> vector<8x1xf32>
    %53 = vector.broadcast %52 : vector<8x1xf32> to vector<8x8xf32>
    %54 = arith.mulf %49, %53 : vector<8x8xf32>
    %cst_18 = arith.constant dense<0.000000e+00> : vector<8x8xf32>
    %55 = tpu.matmul %54, %43, %cst_18 {dimension_numbers = #tpu.dot_dimension_numbers<[1], [0], [0], [1], [0, 0, 1, 1], [], []>} : vector<8x8xf32>, vector<8x8xf32>, vector<8x8xf32> -> vector<8x8xf32>
    %56 = vector.extract_strided_slice %10 {offsets = [0, 24], sizes = [8, 8], strides = [1, 1]} : vector<8x96xf32> to vector<8x8xf32>
    %57 = vector.extract_strided_slice %10 {offsets = [0, 56], sizes = [8, 8], strides = [1, 1]} : vector<8x96xf32> to vector<8x8xf32>
    %58 = vector.extract_strided_slice %10 {offsets = [0, 88], sizes = [8, 8], strides = [1, 1]} : vector<8x96xf32> to vector<8x8xf32>
    %cst_19 = arith.constant dense<0.000000e+00> : vector<8x8xf32>
    %59 = tpu.matmul %56, %57, %cst_19 {dimension_numbers = #tpu.dot_dimension_numbers<[1], [1], [0], [0], [0, 0, 1, 0], [], []>} : vector<8x8xf32>, vector<8x8xf32>, vector<8x8xf32> -> vector<8x8xf32>
    %cst_20 = arith.constant dense<0xFF800000> : vector<8xf32>
    %60 = vector.multi_reduction <maximumf>, %59, %cst_20 [1] : vector<8x8xf32> to vector<8xf32>
    %61 = vector.shape_cast %60 : vector<8xf32> to vector<8x1xf32>
    %62 = vector.broadcast %61 : vector<8x1xf32> to vector<8x8xf32>
    %63 = arith.subf %59, %62 : vector<8x8xf32>
    %64 = math.exp %63 : vector<8x8xf32>
    %cst_21 = arith.constant dense<0.000000e+00> : vector<8xf32>
    %65 = vector.multi_reduction <add>, %64, %cst_21 [1] : vector<8x8xf32> to vector<8xf32>
    %66 = vector.shape_cast %65 : vector<8xf32> to vector<8x1xf32>
    %67 = tpu.reciprocal %66 {approx = true} : vector<8x1xf32> -> vector<8x1xf32>
    %68 = vector.broadcast %67 : vector<8x1xf32> to vector<8x8xf32>
    %69 = arith.mulf %64, %68 : vector<8x8xf32>
    %cst_22 = arith.constant dense<0.000000e+00> : vector<8x8xf32>
    %70 = tpu.matmul %69, %58, %cst_22 {dimension_numbers = #tpu.dot_dimension_numbers<[1], [0], [0], [1], [0, 0, 1, 1], [], []>} : vector<8x8xf32>, vector<8x8xf32>, vector<8x8xf32> -> vector<8x8xf32>
    %71 = tpu.concatenate %25, %40, %55, %70 in 1 : vector<8x8xf32>, vector<8x8xf32>, vector<8x8xf32>, vector<8x8xf32> -> vector<8x32xf32>
    %c0_23 = arith.constant 0 : index
    %c0_24 = arith.constant 0 : index
    %c0_25 = arith.constant 0 : index
    %72 = vector.load %arg4[%c0_23, %c0_24, %c0_25] : memref<2x32x32xf32, #tpu.memory_space<vmem>>, vector<1x32x32xf32>
    %73 = vector.shape_cast %72 : vector<1x32x32xf32> to vector<32x32xf32>
    %cst_26 = arith.constant dense<0.000000e+00> : vector<8x32xf32>
    %74 = tpu.matmul %71, %73, %cst_26 {dimension_numbers = #tpu.dot_dimension_numbers<[1], [0], [0], [1], [0, 0, 1, 1], [], []>} : vector<8x32xf32>, vector<32x32xf32>, vector<8x32xf32> -> vector<8x32xf32>
    %c0_27 = arith.constant 0 : index
    %c0_28 = arith.constant 0 : index
    %c0_29 = arith.constant 0 : index
    %75 = vector.load %arg8[%c0_27, %c0_28, %c0_29] : memref<2x6x32xf32, #tpu.memory_space<vmem>>, vector<1x1x32xf32>
    %76 = vector.shape_cast %75 : vector<1x1x32xf32> to vector<32xf32>
    %77 = vector.shape_cast %76 : vector<32xf32> to vector<1x32xf32>
    %78 = vector.broadcast %77 : vector<1x32xf32> to vector<8x32xf32>
    %79 = arith.addf %74, %78 : vector<8x32xf32>
    %80 = arith.addf %1, %79 : vector<8x32xf32>
    %c0_30 = arith.constant 0 : index
    %c1 = arith.constant 1 : index
    %c0_31 = arith.constant 0 : index
    %81 = vector.load %arg8[%c0_30, %c1, %c0_31] : memref<2x6x32xf32, #tpu.memory_space<vmem>>, vector<1x1x32xf32>
    %82 = vector.shape_cast %81 : vector<1x1x32xf32> to vector<32xf32>
    %c0_32 = arith.constant 0 : index
    %c2 = arith.constant 2 : index
    %c0_33 = arith.constant 0 : index
    %83 = vector.load %arg8[%c0_32, %c2, %c0_33] : memref<2x6x32xf32, #tpu.memory_space<vmem>>, vector<1x1x32xf32>
    %84 = vector.shape_cast %83 : vector<1x1x32xf32> to vector<32xf32>
    %cst_34 = arith.constant dense<0.000000e+00> : vector<8xf32>
    %85 = vector.multi_reduction <add>, %80, %cst_34 [1] : vector<8x32xf32> to vector<8xf32>
    %86 = vector.shape_cast %85 : vector<8xf32> to vector<8x1xf32>
    %cst_35 = arith.constant 3.200000e+01 : f32
    %87 = vector.broadcast %cst_35 : f32 to vector<8x1xf32>
    %88 = arith.divf %86, %87 : vector<8x1xf32>
    %89 = vector.broadcast %88 : vector<8x1xf32> to vector<8x32xf32>
    %90 = arith.subf %80, %89 : vector<8x32xf32>
    %91 = arith.mulf %90, %90 : vector<8x32xf32>
    %cst_36 = arith.constant dense<0.000000e+00> : vector<8xf32>
    %92 = vector.multi_reduction <add>, %91, %cst_36 [1] : vector<8x32xf32> to vector<8xf32>
    %93 = vector.shape_cast %92 : vector<8xf32> to vector<8x1xf32>
    %cst_37 = arith.constant 3.200000e+01 : f32
    %94 = vector.broadcast %cst_37 : f32 to vector<8x1xf32>
    %95 = arith.divf %93, %94 : vector<8x1xf32>
    %cst_38 = arith.constant 9.99999974E-6 : f32
    %96 = vector.broadcast %cst_38 : f32 to vector<8x1xf32>
    %97 = arith.addf %95, %96 : vector<8x1xf32>
    %98 = math.rsqrt %97 : vector<8x1xf32>
    %99 = vector.broadcast %98 : vector<8x1xf32> to vector<8x32xf32>
    %100 = arith.mulf %90, %99 : vector<8x32xf32>
    %101 = vector.shape_cast %82 : vector<32xf32> to vector<1x32xf32>
    %102 = vector.broadcast %101 : vector<1x32xf32> to vector<8x32xf32>
    %103 = arith.mulf %100, %102 : vector<8x32xf32>
    %104 = vector.shape_cast %84 : vector<32xf32> to vector<1x32xf32>
    %105 = vector.broadcast %104 : vector<1x32xf32> to vector<8x32xf32>
    %106 = arith.addf %103, %105 : vector<8x32xf32>
    %107 = arith.truncf %106 : vector<8x32xf32> to vector<8x32xbf16>
    %c0_39 = arith.constant 0 : index
    %c0_40 = arith.constant 0 : index
    %c0_41 = arith.constant 0 : index
    %108 = vector.load %arg5[%c0_39, %c0_40, %c0_41] : memref<2x32x512xbf16, #tpu.memory_space<vmem>>, vector<1x32x512xbf16>
    %109 = vector.shape_cast %108 : vector<1x32x512xbf16> to vector<32x512xbf16>
    %cst_42 = arith.constant dense<0.000000e+00> : vector<8x512xf32>
    %110 = tpu.matmul %107, %109, %cst_42 {dimension_numbers = #tpu.dot_dimension_numbers<[1], [0], [0], [1], [0, 0, 1, 1], [], []>} : vector<8x32xbf16>, vector<32x512xbf16>, vector<8x512xf32> -> vector<8x512xf32>
    %c0_43 = arith.constant 0 : index
    %c0_44 = arith.constant 0 : index
    %111 = vector.load %arg6[%c0_43, %c0_44] : memref<2x512xf32, #tpu.memory_space<vmem>>, vector<1x512xf32>
    %112 = vector.shape_cast %111 : vector<1x512xf32> to vector<512xf32>
    %113 = vector.shape_cast %112 : vector<512xf32> to vector<1x512xf32>
    %114 = vector.broadcast %113 : vector<1x512xf32> to vector<8x512xf32>
    %115 = arith.addf %110, %114 : vector<8x512xf32>
    %cst_45 = arith.constant 0.000000e+00 : f32
    %116 = vector.broadcast %cst_45 : f32 to vector<8x512xf32>
    %117 = arith.maximumf %115, %116 : vector<8x512xf32>
    %118 = arith.truncf %117 : vector<8x512xf32> to vector<8x512xbf16>
    %c0_46 = arith.constant 0 : index
    %c0_47 = arith.constant 0 : index
    %c0_48 = arith.constant 0 : index
    %119 = vector.load %arg7[%c0_46, %c0_47, %c0_48] : memref<2x512x32xbf16, #tpu.memory_space<vmem>>, vector<1x512x32xbf16>
    %120 = vector.shape_cast %119 : vector<1x512x32xbf16> to vector<512x32xbf16>
    %cst_49 = arith.constant dense<0.000000e+00> : vector<8x32xf32>
    %121 = tpu.matmul %118, %120, %cst_49 {dimension_numbers = #tpu.dot_dimension_numbers<[1], [0], [0], [1], [0, 0, 1, 1], [], []>} : vector<8x512xbf16>, vector<512x32xbf16>, vector<8x32xf32> -> vector<8x32xf32>
    %c0_50 = arith.constant 0 : index
    %c3 = arith.constant 3 : index
    %c0_51 = arith.constant 0 : index
    %122 = vector.load %arg8[%c0_50, %c3, %c0_51] : memref<2x6x32xf32, #tpu.memory_space<vmem>>, vector<1x1x32xf32>
    %123 = vector.shape_cast %122 : vector<1x1x32xf32> to vector<32xf32>
    %124 = vector.shape_cast %123 : vector<32xf32> to vector<1x32xf32>
    %125 = vector.broadcast %124 : vector<1x32xf32> to vector<8x32xf32>
    %126 = arith.addf %121, %125 : vector<8x32xf32>
    %127 = arith.addf %106, %126 : vector<8x32xf32>
    %c0_52 = arith.constant 0 : index
    %c4 = arith.constant 4 : index
    %c0_53 = arith.constant 0 : index
    %128 = vector.load %arg8[%c0_52, %c4, %c0_53] : memref<2x6x32xf32, #tpu.memory_space<vmem>>, vector<1x1x32xf32>
    %129 = vector.shape_cast %128 : vector<1x1x32xf32> to vector<32xf32>
    %c0_54 = arith.constant 0 : index
    %c5 = arith.constant 5 : index
    %c0_55 = arith.constant 0 : index
    %130 = vector.load %arg8[%c0_54, %c5, %c0_55] : memref<2x6x32xf32, #tpu.memory_space<vmem>>, vector<1x1x32xf32>
    %131 = vector.shape_cast %130 : vector<1x1x32xf32> to vector<32xf32>
    %cst_56 = arith.constant dense<0.000000e+00> : vector<8xf32>
    %132 = vector.multi_reduction <add>, %127, %cst_56 [1] : vector<8x32xf32> to vector<8xf32>
    %133 = vector.shape_cast %132 : vector<8xf32> to vector<8x1xf32>
    %cst_57 = arith.constant 3.200000e+01 : f32
    %134 = vector.broadcast %cst_57 : f32 to vector<8x1xf32>
    %135 = arith.divf %133, %134 : vector<8x1xf32>
    %136 = vector.broadcast %135 : vector<8x1xf32> to vector<8x32xf32>
    %137 = arith.subf %127, %136 : vector<8x32xf32>
    %138 = arith.mulf %137, %137 : vector<8x32xf32>
    %cst_58 = arith.constant dense<0.000000e+00> : vector<8xf32>
    %139 = vector.multi_reduction <add>, %138, %cst_58 [1] : vector<8x32xf32> to vector<8xf32>
    %140 = vector.shape_cast %139 : vector<8xf32> to vector<8x1xf32>
    %cst_59 = arith.constant 3.200000e+01 : f32
    %141 = vector.broadcast %cst_59 : f32 to vector<8x1xf32>
    %142 = arith.divf %140, %141 : vector<8x1xf32>
    %cst_60 = arith.constant 9.99999974E-6 : f32
    %143 = vector.broadcast %cst_60 : f32 to vector<8x1xf32>
    %144 = arith.addf %142, %143 : vector<8x1xf32>
    %145 = math.rsqrt %144 : vector<8x1xf32>
    %146 = vector.broadcast %145 : vector<8x1xf32> to vector<8x32xf32>
    %147 = arith.mulf %137, %146 : vector<8x32xf32>
    %148 = vector.shape_cast %129 : vector<32xf32> to vector<1x32xf32>
    %149 = vector.broadcast %148 : vector<1x32xf32> to vector<8x32xf32>
    %150 = arith.mulf %147, %149 : vector<8x32xf32>
    %151 = vector.shape_cast %131 : vector<32xf32> to vector<1x32xf32>
    %152 = vector.broadcast %151 : vector<1x32xf32> to vector<8x32xf32>
    %153 = arith.addf %150, %152 : vector<8x32xf32>
    %154 = arith.truncf %153 : vector<8x32xf32> to vector<8x32xbf16>
    %c1_61 = arith.constant 1 : index
    %c0_62 = arith.constant 0 : index
    %c0_63 = arith.constant 0 : index
    %155 = vector.load %arg2[%c1_61, %c0_62, %c0_63] : memref<2x32x96xbf16, #tpu.memory_space<vmem>>, vector<1x32x96xbf16>
    %156 = vector.shape_cast %155 : vector<1x32x96xbf16> to vector<32x96xbf16>
    %cst_64 = arith.constant dense<0.000000e+00> : vector<8x96xf32>
    %157 = tpu.matmul %154, %156, %cst_64 {dimension_numbers = #tpu.dot_dimension_numbers<[1], [0], [0], [1], [0, 0, 1, 1], [], []>} : vector<8x32xbf16>, vector<32x96xbf16>, vector<8x96xf32> -> vector<8x96xf32>
    %c1_65 = arith.constant 1 : index
    %c0_66 = arith.constant 0 : index
    %158 = vector.load %arg3[%c1_65, %c0_66] : memref<2x96xf32, #tpu.memory_space<vmem>>, vector<1x96xf32>
    %159 = vector.shape_cast %158 : vector<1x96xf32> to vector<96xf32>
    %160 = vector.shape_cast %159 : vector<96xf32> to vector<1x96xf32>
    %161 = vector.broadcast %160 : vector<1x96xf32> to vector<8x96xf32>
    %162 = arith.addf %157, %161 : vector<8x96xf32>
    %163 = vector.extract_strided_slice %162 {offsets = [0, 0], sizes = [8, 8], strides = [1, 1]} : vector<8x96xf32> to vector<8x8xf32>
    %164 = vector.extract_strided_slice %162 {offsets = [0, 32], sizes = [8, 8], strides = [1, 1]} : vector<8x96xf32> to vector<8x8xf32>
    %165 = vector.extract_strided_slice %162 {offsets = [0, 64], sizes = [8, 8], strides = [1, 1]} : vector<8x96xf32> to vector<8x8xf32>
    %cst_67 = arith.constant dense<0.000000e+00> : vector<8x8xf32>
    %166 = tpu.matmul %163, %164, %cst_67 {dimension_numbers = #tpu.dot_dimension_numbers<[1], [1], [0], [0], [0, 0, 1, 0], [], []>} : vector<8x8xf32>, vector<8x8xf32>, vector<8x8xf32> -> vector<8x8xf32>
    %cst_68 = arith.constant dense<0xFF800000> : vector<8xf32>
    %167 = vector.multi_reduction <maximumf>, %166, %cst_68 [1] : vector<8x8xf32> to vector<8xf32>
    %168 = vector.shape_cast %167 : vector<8xf32> to vector<8x1xf32>
    %169 = vector.broadcast %168 : vector<8x1xf32> to vector<8x8xf32>
    %170 = arith.subf %166, %169 : vector<8x8xf32>
    %171 = math.exp %170 : vector<8x8xf32>
    %cst_69 = arith.constant dense<0.000000e+00> : vector<8xf32>
    %172 = vector.multi_reduction <add>, %171, %cst_69 [1] : vector<8x8xf32> to vector<8xf32>
    %173 = vector.shape_cast %172 : vector<8xf32> to vector<8x1xf32>
    %174 = tpu.reciprocal %173 {approx = true} : vector<8x1xf32> -> vector<8x1xf32>
    %175 = vector.broadcast %174 : vector<8x1xf32> to vector<8x8xf32>
    %176 = arith.mulf %171, %175 : vector<8x8xf32>
    %cst_70 = arith.constant dense<0.000000e+00> : vector<8x8xf32>
    %177 = tpu.matmul %176, %165, %cst_70 {dimension_numbers = #tpu.dot_dimension_numbers<[1], [0], [0], [1], [0, 0, 1, 1], [], []>} : vector<8x8xf32>, vector<8x8xf32>, vector<8x8xf32> -> vector<8x8xf32>
    %178 = vector.extract_strided_slice %162 {offsets = [0, 8], sizes = [8, 8], strides = [1, 1]} : vector<8x96xf32> to vector<8x8xf32>
    %179 = vector.extract_strided_slice %162 {offsets = [0, 40], sizes = [8, 8], strides = [1, 1]} : vector<8x96xf32> to vector<8x8xf32>
    %180 = vector.extract_strided_slice %162 {offsets = [0, 72], sizes = [8, 8], strides = [1, 1]} : vector<8x96xf32> to vector<8x8xf32>
    %cst_71 = arith.constant dense<0.000000e+00> : vector<8x8xf32>
    %181 = tpu.matmul %178, %179, %cst_71 {dimension_numbers = #tpu.dot_dimension_numbers<[1], [1], [0], [0], [0, 0, 1, 0], [], []>} : vector<8x8xf32>, vector<8x8xf32>, vector<8x8xf32> -> vector<8x8xf32>
    %cst_72 = arith.constant dense<0xFF800000> : vector<8xf32>
    %182 = vector.multi_reduction <maximumf>, %181, %cst_72 [1] : vector<8x8xf32> to vector<8xf32>
    %183 = vector.shape_cast %182 : vector<8xf32> to vector<8x1xf32>
    %184 = vector.broadcast %183 : vector<8x1xf32> to vector<8x8xf32>
    %185 = arith.subf %181, %184 : vector<8x8xf32>
    %186 = math.exp %185 : vector<8x8xf32>
    %cst_73 = arith.constant dense<0.000000e+00> : vector<8xf32>
    %187 = vector.multi_reduction <add>, %186, %cst_73 [1] : vector<8x8xf32> to vector<8xf32>
    %188 = vector.shape_cast %187 : vector<8xf32> to vector<8x1xf32>
    %189 = tpu.reciprocal %188 {approx = true} : vector<8x1xf32> -> vector<8x1xf32>
    %190 = vector.broadcast %189 : vector<8x1xf32> to vector<8x8xf32>
    %191 = arith.mulf %186, %190 : vector<8x8xf32>
    %cst_74 = arith.constant dense<0.000000e+00> : vector<8x8xf32>
    %192 = tpu.matmul %191, %180, %cst_74 {dimension_numbers = #tpu.dot_dimension_numbers<[1], [0], [0], [1], [0, 0, 1, 1], [], []>} : vector<8x8xf32>, vector<8x8xf32>, vector<8x8xf32> -> vector<8x8xf32>
    %193 = vector.extract_strided_slice %162 {offsets = [0, 16], sizes = [8, 8], strides = [1, 1]} : vector<8x96xf32> to vector<8x8xf32>
    %194 = vector.extract_strided_slice %162 {offsets = [0, 48], sizes = [8, 8], strides = [1, 1]} : vector<8x96xf32> to vector<8x8xf32>
    %195 = vector.extract_strided_slice %162 {offsets = [0, 80], sizes = [8, 8], strides = [1, 1]} : vector<8x96xf32> to vector<8x8xf32>
    %cst_75 = arith.constant dense<0.000000e+00> : vector<8x8xf32>
    %196 = tpu.matmul %193, %194, %cst_75 {dimension_numbers = #tpu.dot_dimension_numbers<[1], [1], [0], [0], [0, 0, 1, 0], [], []>} : vector<8x8xf32>, vector<8x8xf32>, vector<8x8xf32> -> vector<8x8xf32>
    %cst_76 = arith.constant dense<0xFF800000> : vector<8xf32>
    %197 = vector.multi_reduction <maximumf>, %196, %cst_76 [1] : vector<8x8xf32> to vector<8xf32>
    %198 = vector.shape_cast %197 : vector<8xf32> to vector<8x1xf32>
    %199 = vector.broadcast %198 : vector<8x1xf32> to vector<8x8xf32>
    %200 = arith.subf %196, %199 : vector<8x8xf32>
    %201 = math.exp %200 : vector<8x8xf32>
    %cst_77 = arith.constant dense<0.000000e+00> : vector<8xf32>
    %202 = vector.multi_reduction <add>, %201, %cst_77 [1] : vector<8x8xf32> to vector<8xf32>
    %203 = vector.shape_cast %202 : vector<8xf32> to vector<8x1xf32>
    %204 = tpu.reciprocal %203 {approx = true} : vector<8x1xf32> -> vector<8x1xf32>
    %205 = vector.broadcast %204 : vector<8x1xf32> to vector<8x8xf32>
    %206 = arith.mulf %201, %205 : vector<8x8xf32>
    %cst_78 = arith.constant dense<0.000000e+00> : vector<8x8xf32>
    %207 = tpu.matmul %206, %195, %cst_78 {dimension_numbers = #tpu.dot_dimension_numbers<[1], [0], [0], [1], [0, 0, 1, 1], [], []>} : vector<8x8xf32>, vector<8x8xf32>, vector<8x8xf32> -> vector<8x8xf32>
    %208 = vector.extract_strided_slice %162 {offsets = [0, 24], sizes = [8, 8], strides = [1, 1]} : vector<8x96xf32> to vector<8x8xf32>
    %209 = vector.extract_strided_slice %162 {offsets = [0, 56], sizes = [8, 8], strides = [1, 1]} : vector<8x96xf32> to vector<8x8xf32>
    %210 = vector.extract_strided_slice %162 {offsets = [0, 88], sizes = [8, 8], strides = [1, 1]} : vector<8x96xf32> to vector<8x8xf32>
    %cst_79 = arith.constant dense<0.000000e+00> : vector<8x8xf32>
    %211 = tpu.matmul %208, %209, %cst_79 {dimension_numbers = #tpu.dot_dimension_numbers<[1], [1], [0], [0], [0, 0, 1, 0], [], []>} : vector<8x8xf32>, vector<8x8xf32>, vector<8x8xf32> -> vector<8x8xf32>
    %cst_80 = arith.constant dense<0xFF800000> : vector<8xf32>
    %212 = vector.multi_reduction <maximumf>, %211, %cst_80 [1] : vector<8x8xf32> to vector<8xf32>
    %213 = vector.shape_cast %212 : vector<8xf32> to vector<8x1xf32>
    %214 = vector.broadcast %213 : vector<8x1xf32> to vector<8x8xf32>
    %215 = arith.subf %211, %214 : vector<8x8xf32>
    %216 = math.exp %215 : vector<8x8xf32>
    %cst_81 = arith.constant dense<0.000000e+00> : vector<8xf32>
    %217 = vector.multi_reduction <add>, %216, %cst_81 [1] : vector<8x8xf32> to vector<8xf32>
    %218 = vector.shape_cast %217 : vector<8xf32> to vector<8x1xf32>
    %219 = tpu.reciprocal %218 {approx = true} : vector<8x1xf32> -> vector<8x1xf32>
    %220 = vector.broadcast %219 : vector<8x1xf32> to vector<8x8xf32>
    %221 = arith.mulf %216, %220 : vector<8x8xf32>
    %cst_82 = arith.constant dense<0.000000e+00> : vector<8x8xf32>
    %222 = tpu.matmul %221, %210, %cst_82 {dimension_numbers = #tpu.dot_dimension_numbers<[1], [0], [0], [1], [0, 0, 1, 1], [], []>} : vector<8x8xf32>, vector<8x8xf32>, vector<8x8xf32> -> vector<8x8xf32>
    %223 = tpu.concatenate %177, %192, %207, %222 in 1 : vector<8x8xf32>, vector<8x8xf32>, vector<8x8xf32>, vector<8x8xf32> -> vector<8x32xf32>
    %c1_83 = arith.constant 1 : index
    %c0_84 = arith.constant 0 : index
    %c0_85 = arith.constant 0 : index
    %224 = vector.load %arg4[%c1_83, %c0_84, %c0_85] : memref<2x32x32xf32, #tpu.memory_space<vmem>>, vector<1x32x32xf32>
    %225 = vector.shape_cast %224 : vector<1x32x32xf32> to vector<32x32xf32>
    %cst_86 = arith.constant dense<0.000000e+00> : vector<8x32xf32>
    %226 = tpu.matmul %223, %225, %cst_86 {dimension_numbers = #tpu.dot_dimension_numbers<[1], [0], [0], [1], [0, 0, 1, 1], [], []>} : vector<8x32xf32>, vector<32x32xf32>, vector<8x32xf32> -> vector<8x32xf32>
    %c1_87 = arith.constant 1 : index
    %c0_88 = arith.constant 0 : index
    %c0_89 = arith.constant 0 : index
    %227 = vector.load %arg8[%c1_87, %c0_88, %c0_89] : memref<2x6x32xf32, #tpu.memory_space<vmem>>, vector<1x1x32xf32>
    %228 = vector.shape_cast %227 : vector<1x1x32xf32> to vector<32xf32>
    %229 = vector.shape_cast %228 : vector<32xf32> to vector<1x32xf32>
    %230 = vector.broadcast %229 : vector<1x32xf32> to vector<8x32xf32>
    %231 = arith.addf %226, %230 : vector<8x32xf32>
    %232 = arith.addf %153, %231 : vector<8x32xf32>
    %c1_90 = arith.constant 1 : index
    %c1_91 = arith.constant 1 : index
    %c0_92 = arith.constant 0 : index
    %233 = vector.load %arg8[%c1_90, %c1_91, %c0_92] : memref<2x6x32xf32, #tpu.memory_space<vmem>>, vector<1x1x32xf32>
    %234 = vector.shape_cast %233 : vector<1x1x32xf32> to vector<32xf32>
    %c1_93 = arith.constant 1 : index
    %c2_94 = arith.constant 2 : index
    %c0_95 = arith.constant 0 : index
    %235 = vector.load %arg8[%c1_93, %c2_94, %c0_95] : memref<2x6x32xf32, #tpu.memory_space<vmem>>, vector<1x1x32xf32>
    %236 = vector.shape_cast %235 : vector<1x1x32xf32> to vector<32xf32>
    %cst_96 = arith.constant dense<0.000000e+00> : vector<8xf32>
    %237 = vector.multi_reduction <add>, %232, %cst_96 [1] : vector<8x32xf32> to vector<8xf32>
    %238 = vector.shape_cast %237 : vector<8xf32> to vector<8x1xf32>
    %cst_97 = arith.constant 3.200000e+01 : f32
    %239 = vector.broadcast %cst_97 : f32 to vector<8x1xf32>
    %240 = arith.divf %238, %239 : vector<8x1xf32>
    %241 = vector.broadcast %240 : vector<8x1xf32> to vector<8x32xf32>
    %242 = arith.subf %232, %241 : vector<8x32xf32>
    %243 = arith.mulf %242, %242 : vector<8x32xf32>
    %cst_98 = arith.constant dense<0.000000e+00> : vector<8xf32>
    %244 = vector.multi_reduction <add>, %243, %cst_98 [1] : vector<8x32xf32> to vector<8xf32>
    %245 = vector.shape_cast %244 : vector<8xf32> to vector<8x1xf32>
    %cst_99 = arith.constant 3.200000e+01 : f32
    %246 = vector.broadcast %cst_99 : f32 to vector<8x1xf32>
    %247 = arith.divf %245, %246 : vector<8x1xf32>
    %cst_100 = arith.constant 9.99999974E-6 : f32
    %248 = vector.broadcast %cst_100 : f32 to vector<8x1xf32>
    %249 = arith.addf %247, %248 : vector<8x1xf32>
    %250 = math.rsqrt %249 : vector<8x1xf32>
    %251 = vector.broadcast %250 : vector<8x1xf32> to vector<8x32xf32>
    %252 = arith.mulf %242, %251 : vector<8x32xf32>
    %253 = vector.shape_cast %234 : vector<32xf32> to vector<1x32xf32>
    %254 = vector.broadcast %253 : vector<1x32xf32> to vector<8x32xf32>
    %255 = arith.mulf %252, %254 : vector<8x32xf32>
    %256 = vector.shape_cast %236 : vector<32xf32> to vector<1x32xf32>
    %257 = vector.broadcast %256 : vector<1x32xf32> to vector<8x32xf32>
    %258 = arith.addf %255, %257 : vector<8x32xf32>
    %259 = arith.truncf %258 : vector<8x32xf32> to vector<8x32xbf16>
    %c1_101 = arith.constant 1 : index
    %c0_102 = arith.constant 0 : index
    %c0_103 = arith.constant 0 : index
    %260 = vector.load %arg5[%c1_101, %c0_102, %c0_103] : memref<2x32x512xbf16, #tpu.memory_space<vmem>>, vector<1x32x512xbf16>
    %261 = vector.shape_cast %260 : vector<1x32x512xbf16> to vector<32x512xbf16>
    %cst_104 = arith.constant dense<0.000000e+00> : vector<8x512xf32>
    %262 = tpu.matmul %259, %261, %cst_104 {dimension_numbers = #tpu.dot_dimension_numbers<[1], [0], [0], [1], [0, 0, 1, 1], [], []>} : vector<8x32xbf16>, vector<32x512xbf16>, vector<8x512xf32> -> vector<8x512xf32>
    %c1_105 = arith.constant 1 : index
    %c0_106 = arith.constant 0 : index
    %263 = vector.load %arg6[%c1_105, %c0_106] : memref<2x512xf32, #tpu.memory_space<vmem>>, vector<1x512xf32>
    %264 = vector.shape_cast %263 : vector<1x512xf32> to vector<512xf32>
    %265 = vector.shape_cast %264 : vector<512xf32> to vector<1x512xf32>
    %266 = vector.broadcast %265 : vector<1x512xf32> to vector<8x512xf32>
    %267 = arith.addf %262, %266 : vector<8x512xf32>
    %cst_107 = arith.constant 0.000000e+00 : f32
    %268 = vector.broadcast %cst_107 : f32 to vector<8x512xf32>
    %269 = arith.maximumf %267, %268 : vector<8x512xf32>
    %270 = arith.truncf %269 : vector<8x512xf32> to vector<8x512xbf16>
    %c1_108 = arith.constant 1 : index
    %c0_109 = arith.constant 0 : index
    %c0_110 = arith.constant 0 : index
    %271 = vector.load %arg7[%c1_108, %c0_109, %c0_110] : memref<2x512x32xbf16, #tpu.memory_space<vmem>>, vector<1x512x32xbf16>
    %272 = vector.shape_cast %271 : vector<1x512x32xbf16> to vector<512x32xbf16>
    %cst_111 = arith.constant dense<0.000000e+00> : vector<8x32xf32>
    %273 = tpu.matmul %270, %272, %cst_111 {dimension_numbers = #tpu.dot_dimension_numbers<[1], [0], [0], [1], [0, 0, 1, 1], [], []>} : vector<8x512xbf16>, vector<512x32xbf16>, vector<8x32xf32> -> vector<8x32xf32>
    %c1_112 = arith.constant 1 : index
    %c3_113 = arith.constant 3 : index
    %c0_114 = arith.constant 0 : index
    %274 = vector.load %arg8[%c1_112, %c3_113, %c0_114] : memref<2x6x32xf32, #tpu.memory_space<vmem>>, vector<1x1x32xf32>
    %275 = vector.shape_cast %274 : vector<1x1x32xf32> to vector<32xf32>
    %276 = vector.shape_cast %275 : vector<32xf32> to vector<1x32xf32>
    %277 = vector.broadcast %276 : vector<1x32xf32> to vector<8x32xf32>
    %278 = arith.addf %273, %277 : vector<8x32xf32>
    %279 = arith.addf %258, %278 : vector<8x32xf32>
    %c1_115 = arith.constant 1 : index
    %c4_116 = arith.constant 4 : index
    %c0_117 = arith.constant 0 : index
    %280 = vector.load %arg8[%c1_115, %c4_116, %c0_117] : memref<2x6x32xf32, #tpu.memory_space<vmem>>, vector<1x1x32xf32>
    %281 = vector.shape_cast %280 : vector<1x1x32xf32> to vector<32xf32>
    %c1_118 = arith.constant 1 : index
    %c5_119 = arith.constant 5 : index
    %c0_120 = arith.constant 0 : index
    %282 = vector.load %arg8[%c1_118, %c5_119, %c0_120] : memref<2x6x32xf32, #tpu.memory_space<vmem>>, vector<1x1x32xf32>
    %283 = vector.shape_cast %282 : vector<1x1x32xf32> to vector<32xf32>
    %cst_121 = arith.constant dense<0.000000e+00> : vector<8xf32>
    %284 = vector.multi_reduction <add>, %279, %cst_121 [1] : vector<8x32xf32> to vector<8xf32>
    %285 = vector.shape_cast %284 : vector<8xf32> to vector<8x1xf32>
    %cst_122 = arith.constant 3.200000e+01 : f32
    %286 = vector.broadcast %cst_122 : f32 to vector<8x1xf32>
    %287 = arith.divf %285, %286 : vector<8x1xf32>
    %288 = vector.broadcast %287 : vector<8x1xf32> to vector<8x32xf32>
    %289 = arith.subf %279, %288 : vector<8x32xf32>
    %290 = arith.mulf %289, %289 : vector<8x32xf32>
    %cst_123 = arith.constant dense<0.000000e+00> : vector<8xf32>
    %291 = vector.multi_reduction <add>, %290, %cst_123 [1] : vector<8x32xf32> to vector<8xf32>
    %292 = vector.shape_cast %291 : vector<8xf32> to vector<8x1xf32>
    %cst_124 = arith.constant 3.200000e+01 : f32
    %293 = vector.broadcast %cst_124 : f32 to vector<8x1xf32>
    %294 = arith.divf %292, %293 : vector<8x1xf32>
    %cst_125 = arith.constant 9.99999974E-6 : f32
    %295 = vector.broadcast %cst_125 : f32 to vector<8x1xf32>
    %296 = arith.addf %294, %295 : vector<8x1xf32>
    %297 = math.rsqrt %296 : vector<8x1xf32>
    %298 = vector.broadcast %297 : vector<8x1xf32> to vector<8x32xf32>
    %299 = arith.mulf %289, %298 : vector<8x32xf32>
    %300 = vector.shape_cast %281 : vector<32xf32> to vector<1x32xf32>
    %301 = vector.broadcast %300 : vector<1x32xf32> to vector<8x32xf32>
    %302 = arith.mulf %299, %301 : vector<8x32xf32>
    %303 = vector.shape_cast %283 : vector<32xf32> to vector<1x32xf32>
    %304 = vector.broadcast %303 : vector<1x32xf32> to vector<8x32xf32>
    %305 = arith.addf %302, %304 : vector<8x32xf32>
    %c0_126 = arith.constant 0 : index
    %c0_127 = arith.constant 0 : index
    %c0_128 = arith.constant 0 : index
    %306 = vector.load %arg9[%c0_126, %c0_127, %c0_128] : memref<1x8x32xf32, #tpu.memory_space<vmem>>, vector<1x8x32xf32>
    %307 = vector.shape_cast %306 : vector<1x8x32xf32> to vector<8x32xf32>
    %308 = vector.shape_cast %305 : vector<8x32xf32> to vector<1x8x32xf32>
    tpu.vector_store %arg9[%c0_126, %c0_127, %c0_128], %308 {strides = array<i32>} : memref<1x8x32xf32, #tpu.memory_space<vmem>>, vector<1x8x32xf32>,
    return
  }
  func.func @transform_0(%arg0: i32) -> (i32, i32, i32) {
    %c0_i32 = arith.constant 0 : i32
    %c0_i32_0 = arith.constant 0 : i32
    %c0_i32_1 = arith.constant 0 : i32
    return %arg0, %c0_i32, %c0_i32_0 : i32, i32, i32
  }
  func.func @transform_1(%arg0: i32) -> (i32, i32, i32) {
    %c0_i32 = arith.constant 0 : i32
    %c0_i32_0 = arith.constant 0 : i32
    %c0_i32_1 = arith.constant 0 : i32
    %c0_i32_2 = arith.constant 0 : i32
    return %c0_i32, %c0_i32_0, %c0_i32_1 : i32, i32, i32
  }
  func.func @transform_2(%arg0: i32) -> (i32, i32) {
    %c0_i32 = arith.constant 0 : i32
    %c0_i32_0 = arith.constant 0 : i32
    %c0_i32_1 = arith.constant 0 : i32
    return %c0_i32, %c0_i32_0 : i32, i32
  }
  func.func @transform_3(%arg0: i32) -> (i32, i32, i32) {
    %c0_i32 = arith.constant 0 : i32
    %c0_i32_0 = arith.constant 0 : i32
    %c0_i32_1 = arith.constant 0 : i32
    %c0_i32_2 = arith.constant 0 : i32
    return %c0_i32, %c0_i32_0, %c0_i32_1 : i32, i32, i32
  }
  func.func @transform_4(%arg0: i32) -> (i32, i32, i32) {
    %c0_i32 = arith.constant 0 : i32
    %c0_i32_0 = arith.constant 0 : i32
    %c0_i32_1 = arith.constant 0 : i32
    %c0_i32_2 = arith.constant 0 : i32
    return %c0_i32, %c0_i32_0, %c0_i32_1 : i32, i32, i32
  }
  func.func @transform_5(%arg0: i32) -> (i32, i32) {
    %c0_i32 = arith.constant 0 : i32
    %c0_i32_0 = arith.constant 0 : i32
    %c0_i32_1 = arith.constant 0 : i32
    return %c0_i32, %c0_i32_0 : i32, i32
  }
  func.func @transform_6(%arg0: i32) -> (i32, i32, i32) {
    %c0_i32 = arith.constant 0 : i32
    %c0_i32_0 = arith.constant 0 : i32
    %c0_i32_1 = arith.constant 0 : i32
    %c0_i32_2 = arith.constant 0 : i32
    return %c0_i32, %c0_i32_0, %c0_i32_1 : i32, i32, i32
  }
  func.func @transform_7(%arg0: i32) -> (i32, i32, i32) {
    %c0_i32 = arith.constant 0 : i32
    %c0_i32_0 = arith.constant 0 : i32
    %c0_i32_1 = arith.constant 0 : i32
    %c0_i32_2 = arith.constant 0 : i32
    return %c0_i32, %c0_i32_0, %c0_i32_1 : i32, i32, i32
  }
  func.func @transform_8(%arg0: i32) -> (i32, i32, i32) {
    %c0_i32 = arith.constant 0 : i32
    %c0_i32_0 = arith.constant 0 : i32
    %c0_i32_1 = arith.constant 0 : i32
    return %arg0, %c0_i32, %c0_i32_0 : i32, i32, i32
  }
}

</mosaic_0001>

<llo_original>
// kernel: vit_forward.1
$region0: #{vit_forward.1}
  #allocation0 [shape = 'u32[]', space=smem, size = 0x4, offset = 0x4, fixed_abs, tag = 'smem constant byte address 0x4 - core index']
  #allocation1 [shape = 'u32[72,128]{1,0:T(1,128)}', space=vmem, size = 0x9000, scoped, tag = 'internal scratch']
  %s0 = inlined_call_operand.vmem [shape: f32[2,8,32], index: 0, kind: input, shape index: {}]
  %s1 = inlined_call_operand.vmem [shape: bf16[2,32,96], index: 1, kind: input, shape index: {}]
  %s2 = inlined_call_operand.vmem [shape: f32[2,96], index: 2, kind: input, shape index: {}]
  %s3 = inlined_call_operand.vmem [shape: f32[2,32,32], index: 3, kind: input, shape index: {}]
  %s4 = inlined_call_operand.vmem [shape: bf16[2,32,512], index: 4, kind: input, shape index: {}]
  %s5 = inlined_call_operand.vmem [shape: f32[2,512], index: 5, kind: input, shape index: {}]
  %s6 = inlined_call_operand.vmem [shape: bf16[2,512,32], index: 6, kind: input, shape index: {}]
  %s7 = inlined_call_operand.vmem [shape: f32[2,6,32], index: 7, kind: input, shape index: {}]
  %s8 = inlined_call_operand.hbm [shape: f32[2,8,32], index: 8, kind: output, shape index: {}]
  %s9 = sld [smem:[#allocation0]]
  $region65: #{vit_forward.1} parent=0
    _
  %s11 = ssub.s32 1, %s9
  %s12 = scalar_select 0, %s11, %s9
  $region1: #{vit_forward.1} parent=0
    #allocation2 [shape = 'u8[8192]{0}', space=vmem, size = 0x2000, scoped, tag = 'output window, operand 0']
    #allocation3 [shape = 's32[2]{0}', space=sflag, size = 0x8, scoped, tag = 'scoped memory for vit_forward.1']
    %13 = vsyncpa [#allocation3], 0
    %s14 = scalar_lea.sflag [#allocation3], 1
    %15 = vsyncpa %s14, 0
    loop: start=0, step=1, limit=4
    $region2: #{vit_forward.1} parent=1 // loop_pre_header
      _
    $region3: #{vit_forward.1} parent=1 // loop_header
      %s17 = sphi 0, %s21
      %p18 = scmp.ge.s32.totalorder %s17, 4
      %s27 = sphi 0, %s29
      %s30 = sphi 0, %s27
      %s31 = sphi 0, %s30
      %s47 = sphi 0, %s31
      %s51 = sphi 0, %s51
      %s53 = sphi 0, %s51
      %s54 = sphi 0, %s53
      %s68 = sphi 0, %s54
      %s72 = sphi 0, %s72
      %s74 = sphi 0, %s72
      %s75 = sphi 0, %s74
      %s89 = sphi 0, %s75
      %s93 = sphi 0, %s93
      %s95 = sphi 0, %s93
      %s96 = sphi 0, %s95
      %s110 = sphi 0, %s96
      %s114 = sphi 0, %s114
      %s116 = sphi 0, %s114
      %s117 = sphi 0, %s116
      %s131 = sphi 0, %s117
      %s135 = sphi 0, %s135
      %s137 = sphi 0, %s135
      %s138 = sphi 0, %s137
      %s152 = sphi 0, %s138
      %s156 = sphi 0, %s156
      %s158 = sphi 0, %s156
      %s159 = sphi 0, %s158
      %s173 = sphi 0, %s159
      %s177 = sphi 0, %s177
      %s179 = sphi 0, %s177
      %s180 = sphi 0, %s179
      %s194 = sphi 0, %s180
      %s200 = sphi 0, %s202
      %s203 = sphi 0, %s200
      %s204 = sphi 0, %s203
      %s220 = sphi 0, %s204
    $region4: #{vit_forward.1} parent=1 // loop_header_branch
      %20 = sbr.rel (%p18) target = $region8
    $region5: #{vit_forward.1} parent=1 // loop_body
      %s22 = ssub.s32 %s17, 1
      %s23 = ssub.s32 %s17, 2
      %s24 = sadd.s32 %s17, 1
      %s25 = ssub.s32 %s17, %s24
      %p26 = scmp.eq.s32.totalorder %s25, 0
      %s28 = sadd.s32 %s27, 1
      %s29 = scalar_select %p26, %s27, %s28
      %p32 = pneg %p26
      %p33 = scmp.eq.s32.totalorder %s17, 1
      %p34 = por %p32, %p33
      %p35 = scmp.ne.s32.totalorder %s27, %s30
      %p36 = scmp.eq.s32.totalorder %s17, 0
      %p37 = por %p35, %p36
      %p38 = scmp.ne.s32.totalorder %s27, %s30
      %p39 = scmp.eq.s32.totalorder %s22, 1
      %p40 = por %p38, %p39
      %p41 = scmp.ne.s32.totalorder %s30, %s31
      %p42 = scmp.eq.s32.totalorder %s22, 0
      %p43 = por %p41, %p42
      %p44 = scmp.ne.s32.totalorder %s30, %s31
      %p45 = scmp.eq.s32.totalorder %s23, 1
      %p46 = por %p44, %p45
      %p48 = scmp.ne.s32.totalorder %s31, %s47
      %p49 = scmp.eq.s32.totalorder %s23, 0
      %p50 = por %p48, %p49
      %s52 = sadd.s32 %s51, 1
      %p55 = scmp.eq.s32.totalorder %s17, 1
      %p56 = scmp.ne.s32.totalorder %s51, %s53
      %p57 = scmp.eq.s32.totalorder %s17, 0
      %p58 = por %p56, %p57
      %p59 = scmp.ne.s32.totalorder %s51, %s53
      %p60 = scmp.eq.s32.totalorder %s22, 1
      %p61 = por %p59, %p60
      %p62 = scmp.ne.s32.totalorder %s53, %s54
      %p63 = scmp.eq.s32.totalorder %s22, 0
      %p64 = por %p62, %p63
      %p65 = scmp.ne.s32.totalorder %s53, %s54
      %p66 = scmp.eq.s32.totalorder %s23, 1
      %p67 = por %p65, %p66
      %p69 = scmp.ne.s32.totalorder %s54, %s68
      %p70 = scmp.eq.s32.totalorder %s23, 0
      %p71 = por %p69, %p70
      %s73 = sadd.s32 %s72, 1
      %p76 = scmp.eq.s32.totalorder %s17, 1
      %p77 = scmp.ne.s32.totalorder %s72, %s74
      %p78 = scmp.eq.s32.totalorder %s17, 0
      %p79 = por %p77, %p78
      %p80 = scmp.ne.s32.totalorder %s72, %s74
      %p81 = scmp.eq.s32.totalorder %s22, 1
      %p82 = por %p80, %p81
      %p83 = scmp.ne.s32.totalorder %s74, %s75
      %p84 = scmp.eq.s32.totalorder %s22, 0
      %p85 = por %p83, %p84
      %p86 = scmp.ne.s32.totalorder %s74, %s75
      %p87 = scmp.eq.s32.totalorder %s23, 1
      %p88 = por %p86, %p87
      %p90 = scmp.ne.s32.totalorder %s75, %s89
      %p91 = scmp.eq.s32.totalorder %s23, 0
      %p92 = por %p90, %p91
      %s94 = sadd.s32 %s93, 1
      %p97 = scmp.eq.s32.totalorder %s17, 1
      %p98 = scmp.ne.s32.totalorder %s93, %s95
      %p99 = scmp.eq.s32.totalorder %s17, 0
      %p100 = por %p98, %p99
      %p101 = scmp.ne.s32.totalorder %s93, %s95
      %p102 = scmp.eq.s32.totalorder %s22, 1
      %p103 = por %p101, %p102
      %p104 = scmp.ne.s32.totalorder %s95, %s96
      %p105 = scmp.eq.s32.totalorder %s22, 0
      %p106 = por %p104, %p105
      %p107 = scmp.ne.s32.totalorder %s95, %s96
      %p108 = scmp.eq.s32.totalorder %s23, 1
      %p109 = por %p107, %p108
      %p111 = scmp.ne.s32.totalorder %s96, %s110
      %p112 = scmp.eq.s32.totalorder %s23, 0
      %p113 = por %p111, %p112
      %s115 = sadd.s32 %s114, 1
      %p118 = scmp.eq.s32.totalorder %s17, 1
      %p119 = scmp.ne.s32.totalorder %s114, %s116
      %p120 = scmp.eq.s32.totalorder %s17, 0
      %p121 = por %p119, %p120
      %p122 = scmp.ne.s32.totalorder %s114, %s116
      %p123 = scmp.eq.s32.totalorder %s22, 1
      %p124 = por %p122, %p123
      %p125 = scmp.ne.s32.totalorder %s116, %s117
      %p126 = scmp.eq.s32.totalorder %s22, 0
      %p127 = por %p125, %p126
      %p128 = scmp.ne.s32.totalorder %s116, %s117
      %p129 = scmp.eq.s32.totalorder %s23, 1
      %p130 = por %p128, %p129
      %p132 = scmp.ne.s32.totalorder %s117, %s131
      %p133 = scmp.eq.s32.totalorder %s23, 0
      %p134 = por %p132, %p133
      %s136 = sadd.s32 %s135, 1
      %p139 = scmp.eq.s32.totalorder %s17, 1
      %p140 = scmp.ne.s32.totalorder %s135, %s137
      %p141 = scmp.eq.s32.totalorder %s17, 0
      %p142 = por %p140, %p141
      %p143 = scmp.ne.s32.totalorder %s135, %s137
      %p144 = scmp.eq.s32.totalorder %s22, 1
      %p145 = por %p143, %p144
      %p146 = scmp.ne.s32.totalorder %s137, %s138
      %p147 = scmp.eq.s32.totalorder %s22, 0
      %p148 = por %p146, %p147
      %p149 = scmp.ne.s32.totalorder %s137, %s138
      %p150 = scmp.eq.s32.totalorder %s23, 1
      %p151 = por %p149, %p150
      %p153 = scmp.ne.s32.totalorder %s138, %s152
      %p154 = scmp.eq.s32.totalorder %s23, 0
      %p155 = por %p153, %p154
      %s157 = sadd.s32 %s156, 1
      %p160 = scmp.eq.s32.totalorder %s17, 1
      %p161 = scmp.ne.s32.totalorder %s156, %s158
      %p162 = scmp.eq.s32.totalorder %s17, 0
      %p163 = por %p161, %p162
      %p164 = scmp.ne.s32.totalorder %s156, %s158
      %p165 = scmp.eq.s32.totalorder %s22, 1
      %p166 = por %p164, %p165
      %p167 = scmp.ne.s32.totalorder %s158, %s159
      %p168 = scmp.eq.s32.totalorder %s22, 0
      %p169 = por %p167, %p168
      %p170 = scmp.ne.s32.totalorder %s158, %s159
      %p171 = scmp.eq.s32.totalorder %s23, 1
      %p172 = por %p170, %p171
      %p174 = scmp.ne.s32.totalorder %s159, %s173
      %p175 = scmp.eq.s32.totalorder %s23, 0
      %p176 = por %p174, %p175
      %s178 = sadd.s32 %s177, 1
      %p181 = scmp.eq.s32.totalorder %s17, 1
      %p182 = scmp.ne.s32.totalorder %s177, %s179
      %p183 = scmp.eq.s32.totalorder %s17, 0
      %p184 = por %p182, %p183
      %p185 = scmp.ne.s32.totalorder %s177, %s179
      %p186 = scmp.eq.s32.totalorder %s22, 1
      %p187 = por %p185, %p186
      %p188 = scmp.ne.s32.totalorder %s179, %s180
      %p189 = scmp.eq.s32.totalorder %s22, 0
      %p190 = por %p188, %p189
      %p191 = scmp.ne.s32.totalorder %s179, %s180
      %p192 = scmp.eq.s32.totalorder %s23, 1
      %p193 = por %p191, %p192
      %p195 = scmp.ne.s32.totalorder %s180, %s194
      %p196 = scmp.eq.s32.totalorder %s23, 0
      %p197 = por %p195, %p196
      %s198 = ssub.s32 %s17, %s24
      %p199 = scmp.eq.s32.totalorder %s198, 0
      %s201 = sadd.s32 %s200, 1
      %s202 = scalar_select %p199, %s200, %s201
      %p205 = pneg %p199
      %p206 = scmp.eq.s32.totalorder %s17, 1
      %p207 = por %p205, %p206
      %p208 = scmp.ne.s32.totalorder %s200, %s203
      %p209 = scmp.eq.s32.totalorder %s17, 0
      %p210 = por %p208, %p209
      %p211 = scmp.ne.s32.totalorder %s200, %s203
      %p212 = scmp.eq.s32.totalorder %s22, 1
      %p213 = por %p211, %p212
      %p214 = scmp.ne.s32.totalorder %s203, %s204
      %p215 = scmp.eq.s32.totalorder %s22, 0
      %p216 = por %p214, %p215
      %p217 = scmp.ne.s32.totalorder %s203, %s204
      %p218 = scmp.eq.s32.totalorder %s23, 1
      %p219 = por %p217, %p218
      %p221 = scmp.ne.s32.totalorder %s204, %s220
      %p222 = scmp.eq.s32.totalorder %s23, 0
      %p223 = por %p221, %p222
      %p224 = scmp.le.s32.totalorder 1, %s17
      %p225 = scmp.lt.s32.totalorder %s17, 3
      %p226 = pnand %p224, %p225
      %p227 = pneg %p226
      // Predicated region
      $region9: #{vit_forward.1} parent=5 // pred_check
        _
      $region10: #{vit_forward.1} parent=5 // pred_check_branch
        %229 = sbr.rel (%p226) target = $region12
      $region11: #{vit_forward.1} parent=5 // pred_region
        %s230 = ssub.s32 %s17, 1
        // Predicated region
        $region13: #{vit_forward.1} parent=11 // pred_check
          %p231 = pneg %p64
        $region14: #{vit_forward.1} parent=11 // pred_check_branch
          %233 = sbr.rel (%p231) target = $region16
        $region15: #{vit_forward.1} parent=11 // pred_region
          _
        $region16: #{vit_forward.1} parent=11 // pred_fallthru
          _
        // Predicated region
        $region17: #{vit_forward.1} parent=11 // pred_check
          %p234 = pneg %p85
        $region18: #{vit_forward.1} parent=11 // pred_check_branch
          %236 = sbr.rel (%p234) target = $region20
        $region19: #{vit_forward.1} parent=11 // pred_region
          _
        $region20: #{vit_forward.1} parent=11 // pred_fallthru
          _
        // Predicated region
        $region21: #{vit_forward.1} parent=11 // pred_check
          %p237 = pneg %p106
        $region22: #{vit_forward.1} parent=11 // pred_check_branch
          %239 = sbr.rel (%p237) target = $region24
        $region23: #{vit_forward.1} parent=11 // pred_region
          _
        $region24: #{vit_forward.1} parent=11 // pred_fallthru
          _
        // Predicated region
        $region25: #{vit_forward.1} parent=11 // pred_check
          %p240 = pneg %p127
        $region26: #{vit_forward.1} parent=11 // pred_check_branch
          %242 = sbr.rel (%p240) target = $region28
        $region27: #{vit_forward.1} parent=11 // pred_region
          _
        $region28: #{vit_forward.1} parent=11 // pred_fallthru
          _
        // Predicated region
        $region29: #{vit_forward.1} parent=11 // pred_check
          %p243 = pneg %p148
        $region30: #{vit_forward.1} parent=11 // pred_check_branch
          %245 = sbr.rel (%p243) target = $region32
        $region31: #{vit_forward.1} parent=11 // pred_region
          _
        $region32: #{vit_forward.1} parent=11 // pred_fallthru
          _
        // Predicated region
        $region33: #{vit_forward.1} parent=11 // pred_check
          %p246 = pneg %p169
        $region34: #{vit_forward.1} parent=11 // pred_check_branch
          %248 = sbr.rel (%p246) target = $region36
        $region35: #{vit_forward.1} parent=11 // pred_region
          _
        $region36: #{vit_forward.1} parent=11 // pred_fallthru
          _
        // Predicated region
        $region37: #{vit_forward.1} parent=11 // pred_check
          %p249 = pneg %p190
        $region38: #{vit_forward.1} parent=11 // pred_check_branch
          %251 = sbr.rel (%p249) target = $region40
        $region39: #{vit_forward.1} parent=11 // pred_region
          _
        $region40: #{vit_forward.1} parent=11 // pred_fallthru
          _
      $region12: #{vit_forward.1} parent=5 // pred_fallthru
        _
      %p252 = scmp.lt.s32.totalorder %s17, 2
      // Predicated region
      $region41: #{vit_forward.1} parent=5 // pred_check
        %p253 = pneg %p252
      $region42: #{vit_forward.1} parent=5 // pred_check_branch
        %255 = sbr.rel (%p253) target = $region44
      $region43: #{vit_forward.1} parent=5 // pred_region
        // Predicated region
        $region45: #{vit_forward.1} parent=43 // pred_check
          %p256 = pneg %p37
        $region46: #{vit_forward.1} parent=43 // pred_check_branch
          %258 = sbr.rel (%p256) target = $region48
        $region47: #{vit_forward.1} parent=43 // pred_region
          %p259 = scmp.lt.s32.totalorder %s17, 1
          %s260 = scalar_select %p259, %s17, 1
          %s261 = smul.addr %s260, 8
          %s262 = scalar_lea.vmem %s0, %s261
        $region48: #{vit_forward.1} parent=43 // pred_fallthru
          _
      $region44: #{vit_forward.1} parent=5 // pred_fallthru
        _
      %p263 = scmp.le.s32.totalorder 1, %s17
      %p264 = scmp.lt.s32.totalorder %s17, 3
      %p265 = pnand %p263, %p264
      %p266 = pneg %p265
      // Predicated region
      $region49: #{vit_forward.1} parent=5 // pred_check
        _
      $region50: #{vit_forward.1} parent=5 // pred_check_branch
        %268 = sbr.rel (%p265) target = $region52
      $region51: #{vit_forward.1} parent=5 // pred_region
        %s269 = ssub.s32 %s17, 1
        %p270 = scmp.lt.s32.totalorder %s22, 1
        %s271 = scalar_select %p270, %s22, 1
        %s272 = smul.addr %s271, 8
        %s273 = scalar_lea.vmem %s0, %s272
        %p274 = pneg %p43
        %p275 = pneg %p40
        %p276 = pneg %p64
        %p277 = pneg %p61
        %p278 = pneg %p85
        %p279 = pneg %p82
        %p280 = pneg %p106
        %p281 = pneg %p103
        %p282 = pneg %p127
        %p283 = pneg %p124
        %p284 = pneg %p148
        %p285 = pneg %p145
        %p286 = pneg %p169
        %p287 = pneg %p166
        %p288 = pneg %p190
        %p289 = pneg %p187
        %p290 = pneg %p216
        %p291 = pneg %p213
        %s292 = sand.u32 %s203, 1
        %s293 = scalar_lea.sflag [#allocation3], %s292
        %s294 = sand.u32 %s203, 1
        %s295 = smul.addr %s294, 8
        %s296 = scalar_lea.vmem [#allocation2], %s295
        %p297 = scmp.lt.s32.totalorder %s22, 1
        %s298 = scalar_select %p297, %s22, 1
        %s299 = smul.addr %s298, 8
        %s300 = scalar_lea.vmem %s0, %s299
        %v302 = vld [vmem:[%s300] sm:$0xff]
        %v303 = vpack.c.bf16 %v302, %v302
        %v304 = vld [vmem:[%s1] sm:$0xf]
        %v305 = vld [vmem:[%s1 + $0x4] sm:$0xf]
        %v306 = vld [vmem:[%s1 + $0x8] sm:$0xf]
        %v307 = vld [vmem:[%s1 + $0xc] sm:$0xf]
        %v308 = vld [vmem:[%s2] sm:$0x1]
        %v309 = vperm.slane %v308, 0
        %v314 = vunpack.c.l.b16 %v304
        %v315 = vunpack.c.l.b16 %v305
        %v316 = vunpack.c.l.b16 %v306
        %v317 = vunpack.c.l.b16 %v307
        %v318 = vpack.c.b16 %v315, %v314
        %v319 = vpack.c.b16 %v317, %v316
        %vm322 = vcmask 261120
        %v324 = vsel %vm322, %v303, 0
        %326 = vmatpush.bf16.msra.mxu0 0
        %327 = vmatpush.bf16.msra.mxu0 0
        %328 = vmatpush.bf16.msra.mxu0 0
        %329 = vmatpush.bf16.msra.mxu0 0
        %330 = vmatpush.bf16.msra.mxu0 0
        %331 = vmatpush.bf16.msra.mxu0 0
        %332 = vmatpush.bf16.msra.mxu0 %v319
        %333 = vmatpush.bf16.msra.mxu0 %v318
        %334 = vmatmul.bf16.gmra.mxu0 %v324
        %v335 = vpop.f32.mrf.mxu0
        %v336 = vadd.f32 %v309, %v335
        %v337 = vpop.f32.mrf.mxu0
        %338 = vdwg.mxu0
        %340 = vrot.lane.b32.xlu0 %v336, 96
        %v341 = vpop.permute.xlu0 %340
        %vm342 = vcmask 64512
        %v343 = vsel %vm342, %v336, 0
        %v345 = vsel %vm342, %v341, 0
        %347 = vmatpush.xpose.msra.mxu0 0.0
        %348 = vmatpush.xpose.msra.mxu0 0.0
        %349 = vmatpush.xpose.msra.mxu0 0.0
        %350 = vmatpush.xpose.msra.mxu0 0.0
        %351 = vmatpush.xpose.msra.mxu0 0.0
        %352 = vmatpush.xpose.msra.mxu0 0.0
        %353 = vmatpush.xpose.msra.mxu0 0.0
        %354 = vmatpush.xpose.msra.mxu0 0.0
        %355 = vmatpush.xpose.msra.mxu0 0.0
        %356 = vmatpush.xpose.msra.mxu0 0.0
        %357 = vmatpush.xpose.msra.mxu0 0.0
        %358 = vmatpush.xpose.msra.mxu0 0.0
        %359 = vmatpush.xpose.msra.mxu0 0.0
        %360 = vmatpush.xpose.msra.mxu0 0.0
        %361 = vmatpush.xpose.msra.mxu0 0.0
        %362 = vmatpush.xpose.msra.mxu0 %v345
        %363 = vmatmul.f32.gmra.mxu0 %v343
        %v364 = vpop.f32.mrf.mxu0
        %v365 = vadd.f32 0.0, %v364
        %366 = vdwg.mxu0
        %v367 = vsel %vm342, %v365, -inf
        %368 = vmax.xlane.f32.xlu0 %v367
        %v369 = vpop.xlane.xlu0 %368
        %v370 = vsub.f32 %v365, %v369
        %v371 = vmul.f32 %v370, 1.442695
        %v372 = vpow.pop %v371
        %v373 = vsel %vm342, %v372, 0.0
        %374 = vadd.xlane.f32.xlu0 %v373
        %v375 = vpop.xlane.xlu0 %374
        %v376 = vrcp.pop %v375
        %v377 = vmul.f32 %v372, %v376
        %378 = vrot.lane.b32.xlu0 %v336, 64
        %v379 = vpop.permute.xlu0 %378
        %v382 = vsel %vm342, %v377, 0
        %384 = vmatpush.msra.mxu0 0.0
        %385 = vmatpush.msra.mxu0 0.0
        %386 = vmatpush.msra.mxu0 0.0
        %387 = vmatpush.msra.mxu0 0.0
        %388 = vmatpush.msra.mxu0 0.0
        %389 = vmatpush.msra.mxu0 0.0
        %390 = vmatpush.msra.mxu0 0.0
        %391 = vmatpush.msra.mxu0 0.0
        %392 = vmatpush.msra.mxu0 0.0
        %393 = vmatpush.msra.mxu0 0.0
        %394 = vmatpush.msra.mxu0 0.0
        %395 = vmatpush.msra.mxu0 0.0
        %396 = vmatpush.msra.mxu0 0.0
        %397 = vmatpush.msra.mxu0 0.0
        %398 = vmatpush.msra.mxu0 0.0
        %399 = vmatpush.msra.mxu0 %v379
        %400 = vmatmul.f32.gmra.mxu0 %v382
        %v401 = vpop.f32.mrf.mxu0
        %v402 = vadd.f32 0.0, %v401
        %403 = vdwg.mxu0
        %404 = vrot.lane.b32.xlu0 %v336, 120
        %v405 = vpop.permute.xlu0 %404
        %406 = vrot.lane.b32.xlu0 %v336, 88
        %v407 = vpop.permute.xlu0 %406
        %v408 = vsel %vm342, %v405, 0
        %v410 = vsel %vm342, %v407, 0
        %412 = vmatpush.xpose.msra.mxu0 0.0
        %413 = vmatpush.xpose.msra.mxu0 0.0
        %414 = vmatpush.xpose.msra.mxu0 0.0
        %415 = vmatpush.xpose.msra.mxu0 0.0
        %416 = vmatpush.xpose.msra.mxu0 0.0
        %417 = vmatpush.xpose.msra.mxu0 0.0
        %418 = vmatpush.xpose.msra.mxu0 0.0
        %419 = vmatpush.xpose.msra.mxu0 0.0
        %420 = vmatpush.xpose.msra.mxu0 0.0
        %421 = vmatpush.xpose.msra.mxu0 0.0
        %422 = vmatpush.xpose.msra.mxu0 0.0
        %423 = vmatpush.xpose.msra.mxu0 0.0
        %424 = vmatpush.xpose.msra.mxu0 0.0
        %425 = vmatpush.xpose.msra.mxu0 0.0
        %426 = vmatpush.xpose.msra.mxu0 0.0
        %427 = vmatpush.xpose.msra.mxu0 %v410
        %428 = vmatmul.f32.gmra.mxu0 %v408
        %v429 = vpop.f32.mrf.mxu0
        %v430 = vadd.f32 0.0, %v429
        %431 = vdwg.mxu0
        %v432 = vsel %vm342, %v430, -inf
        %433 = vmax.xlane.f32.xlu0 %v432
        %v434 = vpop.xlane.xlu0 %433
        %v435 = vsub.f32 %v430, %v434
        %v436 = vmul.f32 %v435, 1.442695
        %v437 = vpow.pop %v436
        %v438 = vsel %vm342, %v437, 0.0
        %439 = vadd.xlane.f32.xlu0 %v438
        %v440 = vpop.xlane.xlu0 %439
        %v441 = vrcp.pop %v440
        %v442 = vmul.f32 %v437, %v441
        %443 = vrot.lane.b32.xlu0 %v336, 56
        %v444 = vpop.permute.xlu0 %443
        %v447 = vsel %vm342, %v442, 0
        %449 = vmatpush.msra.mxu0 0.0
        %450 = vmatpush.msra.mxu0 0.0
        %451 = vmatpush.msra.mxu0 0.0
        %452 = vmatpush.msra.mxu0 0.0
        %453 = vmatpush.msra.mxu0 0.0
        %454 = vmatpush.msra.mxu0 0.0
        %455 = vmatpush.msra.mxu0 0.0
        %456 = vmatpush.msra.mxu0 0.0
        %457 = vmatpush.msra.mxu0 0.0
        %458 = vmatpush.msra.mxu0 0.0
        %459 = vmatpush.msra.mxu0 0.0
        %460 = vmatpush.msra.mxu0 0.0
        %461 = vmatpush.msra.mxu0 0.0
        %462 = vmatpush.msra.mxu0 0.0
        %463 = vmatpush.msra.mxu0 0.0
        %464 = vmatpush.msra.mxu0 %v444
        %465 = vmatmul.f32.gmra.mxu0 %v447
        %v466 = vpop.f32.mrf.mxu0
        %v467 = vadd.f32 0.0, %v466
        %468 = vdwg.mxu0
        %469 = vrot.lane.b32.xlu0 %v336, 112
        %v470 = vpop.permute.xlu0 %469
        %471 = vrot.lane.b32.xlu0 %v336, 80
        %v472 = vpop.permute.xlu0 %471
        %v473 = vsel %vm342, %v470, 0
        %v475 = vsel %vm342, %v472, 0
        %477 = vmatpush.xpose.msra.mxu0 0.0
        %478 = vmatpush.xpose.msra.mxu0 0.0
        %479 = vmatpush.xpose.msra.mxu0 0.0
        %480 = vmatpush.xpose.msra.mxu0 0.0
        %481 = vmatpush.xpose.msra.mxu0 0.0
        %482 = vmatpush.xpose.msra.mxu0 0.0
        %483 = vmatpush.xpose.msra.mxu0 0.0
        %484 = vmatpush.xpose.msra.mxu0 0.0
        %485 = vmatpush.xpose.msra.mxu0 0.0
        %486 = vmatpush.xpose.msra.mxu0 0.0
        %487 = vmatpush.xpose.msra.mxu0 0.0
        %488 = vmatpush.xpose.msra.mxu0 0.0
        %489 = vmatpush.xpose.msra.mxu0 0.0
        %490 = vmatpush.xpose.msra.mxu0 0.0
        %491 = vmatpush.xpose.msra.mxu0 0.0
        %492 = vmatpush.xpose.msra.mxu0 %v475
        %493 = vmatmul.f32.gmra.mxu0 %v473
        %v494 = vpop.f32.mrf.mxu0
        %v495 = vadd.f32 0.0, %v494
        %496 = vdwg.mxu0
        %v497 = vsel %vm342, %v495, -inf
        %498 = vmax.xlane.f32.xlu0 %v497
        %v499 = vpop.xlane.xlu0 %498
        %v500 = vsub.f32 %v495, %v499
        %v501 = vmul.f32 %v500, 1.442695
        %v502 = vpow.pop %v501
        %v503 = vsel %vm342, %v502, 0.0
        %504 = vadd.xlane.f32.xlu0 %v503
        %v505 = vpop.xlane.xlu0 %504
        %v506 = vrcp.pop %v505
        %v507 = vmul.f32 %v502, %v506
        %508 = vrot.lane.b32.xlu0 %v336, 48
        %v509 = vpop.permute.xlu0 %508
        %v512 = vsel %vm342, %v507, 0
        %514 = vmatpush.msra.mxu0 0.0
        %515 = vmatpush.msra.mxu0 0.0
        %516 = vmatpush.msra.mxu0 0.0
        %517 = vmatpush.msra.mxu0 0.0
        %518 = vmatpush.msra.mxu0 0.0
        %519 = vmatpush.msra.mxu0 0.0
        %520 = vmatpush.msra.mxu0 0.0
        %521 = vmatpush.msra.mxu0 0.0
        %522 = vmatpush.msra.mxu0 0.0
        %523 = vmatpush.msra.mxu0 0.0
        %524 = vmatpush.msra.mxu0 0.0
        %525 = vmatpush.msra.mxu0 0.0
        %526 = vmatpush.msra.mxu0 0.0
        %527 = vmatpush.msra.mxu0 0.0
        %528 = vmatpush.msra.mxu0 0.0
        %529 = vmatpush.msra.mxu0 %v509
        %530 = vmatmul.f32.gmra.mxu0 %v512
        %v531 = vpop.f32.mrf.mxu0
        %v532 = vadd.f32 0.0, %v531
        %533 = vdwg.mxu0
        %534 = vrot.lane.b32.xlu0 %v336, 104
        %v535 = vpop.permute.xlu0 %534
        %536 = vrot.lane.b32.xlu0 %v336, 72
        %v537 = vpop.permute.xlu0 %536
        %v538 = vsel %vm342, %v535, 0
        %v540 = vsel %vm342, %v537, 0
        %542 = vmatpush.xpose.msra.mxu0 0.0
        %543 = vmatpush.xpose.msra.mxu0 0.0
        %544 = vmatpush.xpose.msra.mxu0 0.0
        %545 = vmatpush.xpose.msra.mxu0 0.0
        %546 = vmatpush.xpose.msra.mxu0 0.0
        %547 = vmatpush.xpose.msra.mxu0 0.0
        %548 = vmatpush.xpose.msra.mxu0 0.0
        %549 = vmatpush.xpose.msra.mxu0 0.0
        %550 = vmatpush.xpose.msra.mxu0 0.0
        %551 = vmatpush.xpose.msra.mxu0 0.0
        %552 = vmatpush.xpose.msra.mxu0 0.0
        %553 = vmatpush.xpose.msra.mxu0 0.0
        %554 = vmatpush.xpose.msra.mxu0 0.0
        %555 = vmatpush.xpose.msra.mxu0 0.0
        %556 = vmatpush.xpose.msra.mxu0 0.0
        %557 = vmatpush.xpose.msra.mxu0 %v540
        %558 = vmatmul.f32.gmra.mxu0 %v538
        %v559 = vpop.f32.mrf.mxu0
        %v560 = vadd.f32 0.0, %v559
        %561 = vdwg.mxu0
        %v562 = vsel %vm342, %v560, -inf
        %563 = vmax.xlane.f32.xlu0 %v562
        %v564 = vpop.xlane.xlu0 %563
        %v565 = vsub.f32 %v560, %v564
        %v566 = vmul.f32 %v565, 1.442695
        %v567 = vpow.pop %v566
        %v568 = vsel %vm342, %v567, 0.0
        %569 = vadd.xlane.f32.xlu0 %v568
        %v570 = vpop.xlane.xlu0 %569
        %v571 = vrcp.pop %v570
        %v572 = vmul.f32 %v567, %v571
        %573 = vrot.lane.b32.xlu0 %v336, 40
        %v574 = vpop.permute.xlu0 %573
        %v577 = vsel %vm342, %v572, 0
        %579 = vmatpush.msra.mxu0 0.0
        %580 = vmatpush.msra.mxu0 0.0
        %581 = vmatpush.msra.mxu0 0.0
        %582 = vmatpush.msra.mxu0 0.0
        %583 = vmatpush.msra.mxu0 0.0
        %584 = vmatpush.msra.mxu0 0.0
        %585 = vmatpush.msra.mxu0 0.0
        %586 = vmatpush.msra.mxu0 0.0
        %587 = vmatpush.msra.mxu0 0.0
        %588 = vmatpush.msra.mxu0 0.0
        %589 = vmatpush.msra.mxu0 0.0
        %590 = vmatpush.msra.mxu0 0.0
        %591 = vmatpush.msra.mxu0 0.0
        %592 = vmatpush.msra.mxu0 0.0
        %593 = vmatpush.msra.mxu0 0.0
        %594 = vmatpush.msra.mxu0 %v574
        %595 = vmatmul.f32.gmra.mxu0 %v577
        %v596 = vpop.f32.mrf.mxu0
        %v597 = vadd.f32 0.0, %v596
        %598 = vdwg.mxu0
        %600 = vrot.lane.b32.xlu0 %v467, 8
        %v601 = vpop.permute.xlu0 %600
        %604 = vrot.lane.b32.xlu0 %v532, 16
        %v605 = vpop.permute.xlu0 %604
        %608 = vrot.lane.b32.xlu0 %v597, 24
        %v609 = vpop.permute.xlu0 %608
        %v611 = vsel %vm342, %v402, %v601
        %vm612 = vcmask 130048
        %v613 = vsel %vm612, %v611, %v605
        %vm614 = vcmask 195584
        %v615 = vsel %vm614, %v613, %v609
        %v616 = vld [vmem:[%s3] sm:$0xff]
        %v617 = vld [vmem:[%s3 + $0x8] sm:$0xff]
        %v618 = vld [vmem:[%s3 + $0x10] sm:$0xff]
        %v619 = vld [vmem:[%s3 + $0x18] sm:$0xff]
        %v620 = vld [vmem:[%s7] sm:$0x1]
        %v621 = vperm.slane %v620, 0
        %v623 = vsel %vm322, %v615, 0
        %625 = vmatpush.msra.mxu0 0.0
        %626 = vmatpush.msra.mxu0 0.0
        %627 = vmatpush.msra.mxu0 0.0
        %628 = vmatpush.msra.mxu0 0.0
        %629 = vmatpush.msra.mxu0 0.0
        %630 = vmatpush.msra.mxu0 0.0
        %631 = vmatpush.msra.mxu0 0.0
        %632 = vmatpush.msra.mxu0 0.0
        %633 = vmatpush.msra.mxu0 0.0
        %634 = vmatpush.msra.mxu0 0.0
        %635 = vmatpush.msra.mxu0 0.0
        %636 = vmatpush.msra.mxu0 0.0
        %637 = vmatpush.msra.mxu0 %v619
        %638 = vmatpush.msra.mxu0 %v618
        %639 = vmatpush.msra.mxu0 %v617
        %640 = vmatpush.msra.mxu0 %v616
        %641 = vmatmul.f32.gmra.mxu0 %v623
        %v642 = vpop.f32.mrf.mxu0
        %v643 = vadd.f32 %v621, %v642
        %644 = vdwg.mxu0
        %v645 = vadd.f32 %v302, %v643
        %v646 = vld [vmem:[%s7 + $0x1] sm:$0x1]
        %v647 = vld [vmem:[%s7 + $0x2] sm:$0x1]
        %v648 = vsel %vm322, %v645, 0.0
        %649 = vadd.xlane.f32.xlu0 %v648
        %v650 = vpop.xlane.xlu0 %649
        %v651 = vrcp.pop 32.0
        %v652 = vmul.f32 32.0, %v651
        %v653 = vsub.f32 1.0, %v652
        %v654 = vmul.f32 %v651, %v653
        %v655 = vadd.f32 %v651, %v654
        %vm656 = vweird.f32 %v651
        %v657 = vsel %vm656, %v651, %v655
        %v658 = vmul.f32 %v650, %v657
        %v659 = vsub.f32 %v645, %v658
        %v660 = vmul.f32 %v659, %v659
        %v661 = vsel %vm322, %v660, 0.0
        %662 = vadd.xlane.f32.xlu0 %v661
        %v663 = vpop.xlane.xlu0 %662
        %v664 = vmul.f32 %v663, %v657
        %v665 = vadd.f32 %v664, 1e-05
        %v666 = vrsqrt.pop %v665
        %v667 = vmul.f32 %v666, %v665
        %v668 = vmul.f32 %v667, %v666
        %v669 = vmul.f32 0.5, %v668
        %v670 = vsub.f32 1.5, %v669
        %v671 = vmul.f32 %v666, %v670
        %vm672 = vweird.f32 %v665
        %vm673 = vweird.f32 %v666
        %vm674 = vmor %vm672, %vm673
        %v675 = vsel %vm674, %v666, %v671
        %v676 = vmul.f32 %v659, %v675
        %v677 = vperm.slane %v646, 0
        %v678 = vmul.f32 %v676, %v677
        %v679 = vperm.slane %v647, 0
        %v680 = vadd.f32 %v678, %v679
        %v681 = vpack.c.bf16 %v680, %v680
        %v682 = vld [vmem:[%s4] sm:$0xff]
        %v683 = vld [vmem:[%s4 + $0x8] sm:$0xff]
        %v684 = vld [vmem:[%s4 + $0x10] sm:$0xff]
        %v685 = vld [vmem:[%s4 + $0x18] sm:$0xff]
        %v686 = vld [vmem:[%s4 + $0x20] sm:$0xff]
        %v687 = vld [vmem:[%s4 + $0x28] sm:$0xff]
        %v688 = vld [vmem:[%s4 + $0x30] sm:$0xff]
        %v689 = vld [vmem:[%s4 + $0x38] sm:$0xff]
        %v690 = vld [vmem:[%s5] ss:$2 sm:$0xf]
        %v692 = vperm.slane %v690, 0
        %v693 = vperm.slane %v690, 1
        %v694 = vperm.slane %v690, 2
        %v695 = vperm.slane %v690, 3
        %v708 = vunpack.c.l.b16 %v682
        %v709 = vunpack.c.h.b16 %v682
        %v710 = vunpack.c.l.b16 %v683
        %v711 = vunpack.c.h.b16 %v683
        %v712 = vunpack.c.l.b16 %v684
        %v713 = vunpack.c.h.b16 %v684
        %v714 = vunpack.c.l.b16 %v685
        %v715 = vunpack.c.h.b16 %v685
        %v716 = vunpack.c.l.b16 %v686
        %v717 = vunpack.c.h.b16 %v686
        %v718 = vunpack.c.l.b16 %v687
        %v719 = vunpack.c.h.b16 %v687
        %v720 = vunpack.c.l.b16 %v688
        %v721 = vunpack.c.h.b16 %v688
        %v722 = vunpack.c.l.b16 %v689
        %v723 = vunpack.c.h.b16 %v689
        %v724 = vpack.c.b16 %v712, %v708
        %v725 = vpack.c.b16 %v713, %v709
        %v726 = vpack.c.b16 %v714, %v710
        %v727 = vpack.c.b16 %v715, %v711
        %v728 = vpack.c.b16 %v720, %v716
        %v729 = vpack.c.b16 %v721, %v717
        %v730 = vpack.c.b16 %v722, %v718
        %v731 = vpack.c.b16 %v723, %v719
        %v741 = vsel %vm322, %v681, 0
        %743 = vmatpush.bf16.msra.mxu0 0
        %744 = vmatpush.bf16.msra.mxu0 0
        %745 = vmatpush.bf16.msra.mxu0 0
        %746 = vmatpush.bf16.msra.mxu0 0
        %747 = vmatpush.bf16.msra.mxu0 0
        %748 = vmatpush.bf16.msra.mxu0 0
        %749 = vmatpush.bf16.msra.mxu0 %v728
        %750 = vmatpush.bf16.msra.mxu0 %v724
        %751 = vmatmul.bf16.gmra.mxu0 %v741
        %v752 = vpop.f32.mrf.mxu0
        %v753 = vadd.f32 %v692, %v752
        %v754 = vpop.f32.mrf.mxu0
        %755 = vdwg.mxu0
        %756 = vmatpush.bf16.msra.mxu0 0
        %757 = vmatpush.bf16.msra.mxu0 0
        %758 = vmatpush.bf16.msra.mxu0 0
        %759 = vmatpush.bf16.msra.mxu0 0
        %760 = vmatpush.bf16.msra.mxu0 0
        %761 = vmatpush.bf16.msra.mxu0 0
        %762 = vmatpush.bf16.msra.mxu0 %v729
        %763 = vmatpush.bf16.msra.mxu0 %v725
        %764 = vmatmul.bf16.gmra.mxu0 %v741
        %v765 = vpop.f32.mrf.mxu0
        %v766 = vadd.f32 %v693, %v765
        %v767 = vpop.f32.mrf.mxu0
        %768 = vdwg.mxu0
        %769 = vmatpush.bf16.msra.mxu0 0
        %770 = vmatpush.bf16.msra.mxu0 0
        %771 = vmatpush.bf16.msra.mxu0 0
        %772 = vmatpush.bf16.msra.mxu0 0
        %773 = vmatpush.bf16.msra.mxu0 0
        %774 = vmatpush.bf16.msra.mxu0 0
        %775 = vmatpush.bf16.msra.mxu0 %v730
        %776 = vmatpush.bf16.msra.mxu0 %v726
        %777 = vmatmul.bf16.gmra.mxu0 %v741
        %v778 = vpop.f32.mrf.mxu0
        %v779 = vadd.f32 %v694, %v778
        %v780 = vpop.f32.mrf.mxu0
        %781 = vdwg.mxu0
        %782 = vmatpush.bf16.msra.mxu0 0
        %783 = vmatpush.bf16.msra.mxu0 0
        %784 = vmatpush.bf16.msra.mxu0 0
        %785 = vmatpush.bf16.msra.mxu0 0
        %786 = vmatpush.bf16.msra.mxu0 0
        %787 = vmatpush.bf16.msra.mxu0 0
        %788 = vmatpush.bf16.msra.mxu0 %v731
        %789 = vmatpush.bf16.msra.mxu0 %v727
        %790 = vmatmul.bf16.gmra.mxu0 %v741
        %v791 = vpop.f32.mrf.mxu0
        %v792 = vadd.f32 %v695, %v791
        %v793 = vpop.f32.mrf.mxu0
        %794 = vdwg.mxu0
        %v795 = vmax.f32 %v753, 0.0
        %v796 = vmax.f32 %v766, 0.0
        %v797 = vmax.f32 %v779, 0.0
        %v798 = vmax.f32 %v792, 0.0
        %v799 = vpack.c.bf16 %v795, %v795
        %v800 = vpack.c.bf16 %v796, %v796
        %v801 = vpack.c.bf16 %v797, %v797
        %v802 = vpack.c.bf16 %v798, %v798
        %v803 = vld [vmem:[%s6] sm:$0xf]
        %v804 = vld [vmem:[%s6 + $0x4] sm:$0xf]
        %v805 = vld [vmem:[%s6 + $0x8] sm:$0xf]
        %v806 = vld [vmem:[%s6 + $0xc] sm:$0xf]
        %v807 = vld [vmem:[%s6 + $0x10] sm:$0xf]
        %v808 = vld [vmem:[%s6 + $0x14] sm:$0xf]
        %v809 = vld [vmem:[%s6 + $0x18] sm:$0xf]
        %v810 = vld [vmem:[%s6 + $0x1c] sm:$0xf]
        %v811 = vld [vmem:[%s6 + $0x20] sm:$0xf]
        %v812 = vld [vmem:[%s6 + $0x24] sm:$0xf]
        %v813 = vld [vmem:[%s6 + $0x28] sm:$0xf]
        %v814 = vld [vmem:[%s6 + $0x2c] sm:$0xf]
        %v815 = vld [vmem:[%s6 + $0x30] sm:$0xf]
        %v816 = vld [vmem:[%s6 + $0x34] sm:$0xf]
        %v817 = vld [vmem:[%s6 + $0x38] sm:$0xf]
        %v818 = vld [vmem:[%s6 + $0x3c] sm:$0xf]
        %v819 = vld [vmem:[%s6 + $0x40] sm:$0xf]
        %v820 = vld [vmem:[%s6 + $0x44] sm:$0xf]
        %v821 = vld [vmem:[%s6 + $0x48] sm:$0xf]
        %v822 = vld [vmem:[%s6 + $0x4c] sm:$0xf]
        %v823 = vld [vmem:[%s6 + $0x50] sm:$0xf]
        %v824 = vld [vmem:[%s6 + $0x54] sm:$0xf]
        %v825 = vld [vmem:[%s6 + $0x58] sm:$0xf]
        %v826 = vld [vmem:[%s6 + $0x5c] sm:$0xf]
        %v827 = vld [vmem:[%s6 + $0x60] sm:$0xf]
        %v828 = vld [vmem:[%s6 + $0x64] sm:$0xf]
        %v829 = vld [vmem:[%s6 + $0x68] sm:$0xf]
        %v830 = vld [vmem:[%s6 + $0x6c] sm:$0xf]
        %v831 = vld [vmem:[%s6 + $0x70] sm:$0xf]
        %v832 = vld [vmem:[%s6 + $0x74] sm:$0xf]
        %v833 = vld [vmem:[%s6 + $0x78] sm:$0xf]
        %v834 = vld [vmem:[%s6 + $0x7c] sm:$0xf]
        %v835 = vld [vmem:[%s6 + $0x80] sm:$0xf]
        %v836 = vld [vmem:[%s6 + $0x84] sm:$0xf]
        %v837 = vld [vmem:[%s6 + $0x88] sm:$0xf]
        %v838 = vld [vmem:[%s6 + $0x8c] sm:$0xf]
        %v839 = vld [vmem:[%s6 + $0x90] sm:$0xf]
        %v840 = vld [vmem:[%s6 + $0x94] sm:$0xf]
        %v841 = vld [vmem:[%s6 + $0x98] sm:$0xf]
        %v842 = vld [vmem:[%s6 + $0x9c] sm:$0xf]
        %v843 = vld [vmem:[%s6 + $0xa0] sm:$0xf]
        %v844 = vld [vmem:[%s6 + $0xa4] sm:$0xf]
        %v845 = vld [vmem:[%s6 + $0xa8] sm:$0xf]
        %v846 = vld [vmem:[%s6 + $0xac] sm:$0xf]
        %v847 = vld [vmem:[%s6 + $0xb0] sm:$0xf]
        %v848 = vld [vmem:[%s6 + $0xb4] sm:$0xf]
        %v849 = vld [vmem:[%s6 + $0xb8] sm:$0xf]
        %v850 = vld [vmem:[%s6 + $0xbc] sm:$0xf]
        %v851 = vld [vmem:[%s6 + $0xc0] sm:$0xf]
        %v852 = vld [vmem:[%s6 + $0xc4] sm:$0xf]
        %v853 = vld [vmem:[%s6 + $0xc8] sm:$0xf]
        %v854 = vld [vmem:[%s6 + $0xcc] sm:$0xf]
        %v855 = vld [vmem:[%s6 + $0xd0] sm:$0xf]
        %v856 = vld [vmem:[%s6 + $0xd4] sm:$0xf]
        %v857 = vld [vmem:[%s6 + $0xd8] sm:$0xf]
        %v858 = vld [vmem:[%s6 + $0xdc] sm:$0xf]
        %v859 = vld [vmem:[%s6 + $0xe0] sm:$0xf]
        %v860 = vld [vmem:[%s6 + $0xe4] sm:$0xf]
        %v861 = vld [vmem:[%s6 + $0xe8] sm:$0xf]
        %v862 = vld [vmem:[%s6 + $0xec] sm:$0xf]
        %v863 = vld [vmem:[%s6 + $0xf0] sm:$0xf]
        %v864 = vld [vmem:[%s6 + $0xf4] sm:$0xf]
        %v865 = vld [vmem:[%s6 + $0xf8] sm:$0xf]
        %v866 = vld [vmem:[%s6 + $0xfc] sm:$0xf]
        %v867 = vld [vmem:[%s7 + $0x3] sm:$0x1]
        %v868 = vperm.slane %v867, 0
        %v933 = vunpack.c.l.b16 %v803
        %v934 = vunpack.c.l.b16 %v804
        %v935 = vunpack.c.l.b16 %v805
        %v936 = vunpack.c.l.b16 %v806
        %v937 = vunpack.c.l.b16 %v807
        %v938 = vunpack.c.l.b16 %v808
        %v939 = vunpack.c.l.b16 %v809
        %v940 = vunpack.c.l.b16 %v810
        %v941 = vunpack.c.l.b16 %v811
        %v942 = vunpack.c.l.b16 %v812
        %v943 = vunpack.c.l.b16 %v813
        %v944 = vunpack.c.l.b16 %v814
        %v945 = vunpack.c.l.b16 %v815
        %v946 = vunpack.c.l.b16 %v816
        %v947 = vunpack.c.l.b16 %v817
        %v948 = vunpack.c.l.b16 %v818
        %v949 = vunpack.c.l.b16 %v819
        %v950 = vunpack.c.l.b16 %v820
        %v951 = vunpack.c.l.b16 %v821
        %v952 = vunpack.c.l.b16 %v822
        %v953 = vunpack.c.l.b16 %v823
        %v954 = vunpack.c.l.b16 %v824
        %v955 = vunpack.c.l.b16 %v825
        %v956 = vunpack.c.l.b16 %v826
        %v957 = vunpack.c.l.b16 %v827
        %v958 = vunpack.c.l.b16 %v828
        %v959 = vunpack.c.l.b16 %v829
        %v960 = vunpack.c.l.b16 %v830
        %v961 = vunpack.c.l.b16 %v831
        %v962 = vunpack.c.l.b16 %v832
        %v963 = vunpack.c.l.b16 %v833
        %v964 = vunpack.c.l.b16 %v834
        %v965 = vunpack.c.l.b16 %v835
        %v966 = vunpack.c.l.b16 %v836
        %v967 = vunpack.c.l.b16 %v837
        %v968 = vunpack.c.l.b16 %v838
        %v969 = vunpack.c.l.b16 %v839
        %v970 = vunpack.c.l.b16 %v840
        %v971 = vunpack.c.l.b16 %v841
        %v972 = vunpack.c.l.b16 %v842
        %v973 = vunpack.c.l.b16 %v843
        %v974 = vunpack.c.l.b16 %v844
        %v975 = vunpack.c.l.b16 %v845
        %v976 = vunpack.c.l.b16 %v846
        %v977 = vunpack.c.l.b16 %v847
        %v978 = vunpack.c.l.b16 %v848
        %v979 = vunpack.c.l.b16 %v849
        %v980 = vunpack.c.l.b16 %v850
        %v981 = vunpack.c.l.b16 %v851
        %v982 = vunpack.c.l.b16 %v852
        %v983 = vunpack.c.l.b16 %v853
        %v984 = vunpack.c.l.b16 %v854
        %v985 = vunpack.c.l.b16 %v855
        %v986 = vunpack.c.l.b16 %v856
        %v987 = vunpack.c.l.b16 %v857
        %v988 = vunpack.c.l.b16 %v858
        %v989 = vunpack.c.l.b16 %v859
        %v990 = vunpack.c.l.b16 %v860
        %v991 = vunpack.c.l.b16 %v861
        %v992 = vunpack.c.l.b16 %v862
        %v993 = vunpack.c.l.b16 %v863
        %v994 = vunpack.c.l.b16 %v864
        %v995 = vunpack.c.l.b16 %v865
        %v996 = vunpack.c.l.b16 %v866
        %v997 = vpack.c.b16 %v934, %v933
        %v998 = vpack.c.b16 %v936, %v935
        %v999 = vpack.c.b16 %v938, %v937
        %v1000 = vpack.c.b16 %v940, %v939
        %v1001 = vpack.c.b16 %v942, %v941
        %v1002 = vpack.c.b16 %v944, %v943
        %v1003 = vpack.c.b16 %v946, %v945
        %v1004 = vpack.c.b16 %v948, %v947
        %v1005 = vpack.c.b16 %v950, %v949
        %v1006 = vpack.c.b16 %v952, %v951
        %v1007 = vpack.c.b16 %v954, %v953
        %v1008 = vpack.c.b16 %v956, %v955
        %v1009 = vpack.c.b16 %v958, %v957
        %v1010 = vpack.c.b16 %v960, %v959
        %v1011 = vpack.c.b16 %v962, %v961
        %v1012 = vpack.c.b16 %v964, %v963
        %v1013 = vpack.c.b16 %v966, %v965
        %v1014 = vpack.c.b16 %v968, %v967
        %v1015 = vpack.c.b16 %v970, %v969
        %v1016 = vpack.c.b16 %v972, %v971
        %v1017 = vpack.c.b16 %v974, %v973
        %v1018 = vpack.c.b16 %v976, %v975
        %v1019 = vpack.c.b16 %v978, %v977
        %v1020 = vpack.c.b16 %v980, %v979
        %v1021 = vpack.c.b16 %v982, %v981
        %v1022 = vpack.c.b16 %v984, %v983
        %v1023 = vpack.c.b16 %v986, %v985
        %v1024 = vpack.c.b16 %v988, %v987
        %v1025 = vpack.c.b16 %v990, %v989
        %v1026 = vpack.c.b16 %v992, %v991
        %v1027 = vpack.c.b16 %v994, %v993
        %v1028 = vpack.c.b16 %v996, %v995
        %1061 = vmatpush.bf16.msra.mxu0 %v1004
        %1062 = vmatpush.bf16.msra.mxu0 %v1003
        %1063 = vmatpush.bf16.msra.mxu0 %v1002
        %1064 = vmatpush.bf16.msra.mxu0 %v1001
        %1065 = vmatpush.bf16.msra.mxu0 %v1000
        %1066 = vmatpush.bf16.msra.mxu0 %v999
        %1067 = vmatpush.bf16.msra.mxu0 %v998
        %1068 = vmatpush.bf16.msra.mxu0 %v997
        %1069 = vmatmul.bf16.gmra.mxu0 %v799
        %v1070 = vpop.f32.mrf.mxu0
        %v1071 = vadd.f32 %v868, %v1070
        %v1072 = vpop.f32.mrf.mxu0
        %1073 = vdwg.mxu0
        %1074 = vmatpush.bf16.msra.mxu0 %v1012
        %1075 = vmatpush.bf16.msra.mxu0 %v1011
        %1076 = vmatpush.bf16.msra.mxu0 %v1010
        %1077 = vmatpush.bf16.msra.mxu0 %v1009
        %1078 = vmatpush.bf16.msra.mxu0 %v1008
        %1079 = vmatpush.bf16.msra.mxu0 %v1007
        %1080 = vmatpush.bf16.msra.mxu0 %v1006
        %1081 = vmatpush.bf16.msra.mxu0 %v1005
        %1082 = vmatmul.bf16.gmra.mxu0 %v800
        %v1083 = vpop.f32.mrf.mxu0
        %v1084 = vadd.f32 %v1071, %v1083
        %v1085 = vpop.f32.mrf.mxu0
        %1086 = vdwg.mxu0
        %1087 = vmatpush.bf16.msra.mxu0 %v1020
        %1088 = vmatpush.bf16.msra.mxu0 %v1019
        %1089 = vmatpush.bf16.msra.mxu0 %v1018
        %1090 = vmatpush.bf16.msra.mxu0 %v1017
        %1091 = vmatpush.bf16.msra.mxu0 %v1016
        %1092 = vmatpush.bf16.msra.mxu0 %v1015
        %1093 = vmatpush.bf16.msra.mxu0 %v1014
        %1094 = vmatpush.bf16.msra.mxu0 %v1013
        %1095 = vmatmul.bf16.gmra.mxu0 %v801
        %v1096 = vpop.f32.mrf.mxu0
        %v1097 = vadd.f32 %v1084, %v1096
        %v1098 = vpop.f32.mrf.mxu0
        %1099 = vdwg.mxu0
        %1100 = vmatpush.bf16.msra.mxu0 %v1028
        %1101 = vmatpush.bf16.msra.mxu0 %v1027
        %1102 = vmatpush.bf16.msra.mxu0 %v1026
        %1103 = vmatpush.bf16.msra.mxu0 %v1025
        %1104 = vmatpush.bf16.msra.mxu0 %v1024
        %1105 = vmatpush.bf16.msra.mxu0 %v1023
        %1106 = vmatpush.bf16.msra.mxu0 %v1022
        %1107 = vmatpush.bf16.msra.mxu0 %v1021
        %1108 = vmatmul.bf16.gmra.mxu0 %v802
        %v1109 = vpop.f32.mrf.mxu0
        %v1110 = vadd.f32 %v1097, %v1109
        %v1111 = vpop.f32.mrf.mxu0
        %1112 = vdwg.mxu0
        %v1113 = vadd.f32 %v680, %v1110
        %v1114 = vld [vmem:[%s7 + $0x4] sm:$0x1]
        %v1115 = vld [vmem:[%s7 + $0x5] sm:$0x1]
        %v1116 = vsel %vm322, %v1113, 0.0
        %1117 = vadd.xlane.f32.xlu0 %v1116
        %v1118 = vpop.xlane.xlu0 %1117
        %v1119 = vmul.f32 %v1118, %v657
        %v1120 = vsub.f32 %v1113, %v1119
        %v1121 = vmul.f32 %v1120, %v1120
        %v1122 = vsel %vm322, %v1121, 0.0
        %1123 = vadd.xlane.f32.xlu0 %v1122
        %v1124 = vpop.xlane.xlu0 %1123
        %v1125 = vmul.f32 %v1124, %v657
        %v1126 = vadd.f32 %v1125, 1e-05
        %v1127 = vrsqrt.pop %v1126
        %v1128 = vmul.f32 %v1127, %v1126
        %v1129 = vmul.f32 %v1128, %v1127
        %v1130 = vmul.f32 0.5, %v1129
        %v1131 = vsub.f32 1.5, %v1130
        %v1132 = vmul.f32 %v1127, %v1131
        %vm1133 = vweird.f32 %v1126
        %vm1134 = vweird.f32 %v1127
        %vm1135 = vmor %vm1133, %vm1134
        %v1136 = vsel %vm1135, %v1127, %v1132
        %v1137 = vmul.f32 %v1120, %v1136
        %v1138 = vperm.slane %v1114, 0
        %v1139 = vmul.f32 %v1137, %v1138
        %v1140 = vperm.slane %v1115, 0
        %v1141 = vadd.f32 %v1139, %v1140
        %v1142 = vpack.c.bf16 %v1141, %v1141
        %s1143 = scalar_lea.vmem %s1, 16
        %v1144 = vld [vmem:[%s1143] sm:$0xf]
        %v1145 = vld [vmem:[%s1143 + $0x4] sm:$0xf]
        %v1146 = vld [vmem:[%s1143 + $0x8] sm:$0xf]
        %v1147 = vld [vmem:[%s1143 + $0xc] sm:$0xf]
        %v1148 = vld [vmem:[%s2 + $0x1] sm:$0x1]
        %v1149 = vperm.slane %v1148, 0
        %v1154 = vunpack.c.l.b16 %v1144
        %v1155 = vunpack.c.l.b16 %v1145
        %v1156 = vunpack.c.l.b16 %v1146
        %v1157 = vunpack.c.l.b16 %v1147
        %v1158 = vpack.c.b16 %v1155, %v1154
        %v1159 = vpack.c.b16 %v1157, %v1156
        %v1163 = vsel %vm322, %v1142, 0
        %1165 = vmatpush.bf16.msra.mxu0 0
        %1166 = vmatpush.bf16.msra.mxu0 0
        %1167 = vmatpush.bf16.msra.mxu0 0
        %1168 = vmatpush.bf16.msra.mxu0 0
        %1169 = vmatpush.bf16.msra.mxu0 0
        %1170 = vmatpush.bf16.msra.mxu0 0
        %1171 = vmatpush.bf16.msra.mxu0 %v1159
        %1172 = vmatpush.bf16.msra.mxu0 %v1158
        %1173 = vmatmul.bf16.gmra.mxu0 %v1163
        %v1174 = vpop.f32.mrf.mxu0
        %v1175 = vadd.f32 %v1149, %v1174
        %v1176 = vpop.f32.mrf.mxu0
        %1177 = vdwg.mxu0
        %1179 = vrot.lane.b32.xlu0 %v1175, 96
        %v1180 = vpop.permute.xlu0 %1179
        %v1181 = vsel %vm342, %v1175, 0
        %v1183 = vsel %vm342, %v1180, 0
        %1185 = vmatpush.xpose.msra.mxu0 0.0
        %1186 = vmatpush.xpose.msra.mxu0 0.0
        %1187 = vmatpush.xpose.msra.mxu0 0.0
        %1188 = vmatpush.xpose.msra.mxu0 0.0
        %1189 = vmatpush.xpose.msra.mxu0 0.0
        %1190 = vmatpush.xpose.msra.mxu0 0.0
        %1191 = vmatpush.xpose.msra.mxu0 0.0
        %1192 = vmatpush.xpose.msra.mxu0 0.0
        %1193 = vmatpush.xpose.msra.mxu0 0.0
        %1194 = vmatpush.xpose.msra.mxu0 0.0
        %1195 = vmatpush.xpose.msra.mxu0 0.0
        %1196 = vmatpush.xpose.msra.mxu0 0.0
        %1197 = vmatpush.xpose.msra.mxu0 0.0
        %1198 = vmatpush.xpose.msra.mxu0 0.0
        %1199 = vmatpush.xpose.msra.mxu0 0.0
        %1200 = vmatpush.xpose.msra.mxu0 %v1183
        %1201 = vmatmul.f32.gmra.mxu0 %v1181
        %v1202 = vpop.f32.mrf.mxu0
        %v1203 = vadd.f32 0.0, %v1202
        %1204 = vdwg.mxu0
        %v1205 = vsel %vm342, %v1203, -inf
        %1206 = vmax.xlane.f32.xlu0 %v1205
        %v1207 = vpop.xlane.xlu0 %1206
        %v1208 = vsub.f32 %v1203, %v1207
        %v1209 = vmul.f32 %v1208, 1.442695
        %v1210 = vpow.pop %v1209
        %v1211 = vsel %vm342, %v1210, 0.0
        %1212 = vadd.xlane.f32.xlu0 %v1211
        %v1213 = vpop.xlane.xlu0 %1212
        %v1214 = vrcp.pop %v1213
        %v1215 = vmul.f32 %v1210, %v1214
        %1216 = vrot.lane.b32.xlu0 %v1175, 64
        %v1217 = vpop.permute.xlu0 %1216
        %v1220 = vsel %vm342, %v1215, 0
        %1222 = vmatpush.msra.mxu0 0.0
        %1223 = vmatpush.msra.mxu0 0.0
        %1224 = vmatpush.msra.mxu0 0.0
        %1225 = vmatpush.msra.mxu0 0.0
        %1226 = vmatpush.msra.mxu0 0.0
        %1227 = vmatpush.msra.mxu0 0.0
        %1228 = vmatpush.msra.mxu0 0.0
        %1229 = vmatpush.msra.mxu0 0.0
        %1230 = vmatpush.msra.mxu0 0.0
        %1231 = vmatpush.msra.mxu0 0.0
        %1232 = vmatpush.msra.mxu0 0.0
        %1233 = vmatpush.msra.mxu0 0.0
        %1234 = vmatpush.msra.mxu0 0.0
        %1235 = vmatpush.msra.mxu0 0.0
        %1236 = vmatpush.msra.mxu0 0.0
        %1237 = vmatpush.msra.mxu0 %v1217
        %1238 = vmatmul.f32.gmra.mxu0 %v1220
        %v1239 = vpop.f32.mrf.mxu0
        %v1240 = vadd.f32 0.0, %v1239
        %1241 = vdwg.mxu0
        %1242 = vrot.lane.b32.xlu0 %v1175, 120
        %v1243 = vpop.permute.xlu0 %1242
        %1244 = vrot.lane.b32.xlu0 %v1175, 88
        %v1245 = vpop.permute.xlu0 %1244
        %v1246 = vsel %vm342, %v1243, 0
        %v1248 = vsel %vm342, %v1245, 0
        %1250 = vmatpush.xpose.msra.mxu0 0.0
        %1251 = vmatpush.xpose.msra.mxu0 0.0
        %1252 = vmatpush.xpose.msra.mxu0 0.0
        %1253 = vmatpush.xpose.msra.mxu0 0.0
        %1254 = vmatpush.xpose.msra.mxu0 0.0
        %1255 = vmatpush.xpose.msra.mxu0 0.0
        %1256 = vmatpush.xpose.msra.mxu0 0.0
        %1257 = vmatpush.xpose.msra.mxu0 0.0
        %1258 = vmatpush.xpose.msra.mxu0 0.0
        %1259 = vmatpush.xpose.msra.mxu0 0.0
        %1260 = vmatpush.xpose.msra.mxu0 0.0
        %1261 = vmatpush.xpose.msra.mxu0 0.0
        %1262 = vmatpush.xpose.msra.mxu0 0.0
        %1263 = vmatpush.xpose.msra.mxu0 0.0
        %1264 = vmatpush.xpose.msra.mxu0 0.0
        %1265 = vmatpush.xpose.msra.mxu0 %v1248
        %1266 = vmatmul.f32.gmra.mxu0 %v1246
        %v1267 = vpop.f32.mrf.mxu0
        %v1268 = vadd.f32 0.0, %v1267
        %1269 = vdwg.mxu0
        %v1270 = vsel %vm342, %v1268, -inf
        %1271 = vmax.xlane.f32.xlu0 %v1270
        %v1272 = vpop.xlane.xlu0 %1271
        %v1273 = vsub.f32 %v1268, %v1272
        %v1274 = vmul.f32 %v1273, 1.442695
        %v1275 = vpow.pop %v1274
        %v1276 = vsel %vm342, %v1275, 0.0
        %1277 = vadd.xlane.f32.xlu0 %v1276
        %v1278 = vpop.xlane.xlu0 %1277
        %v1279 = vrcp.pop %v1278
        %v1280 = vmul.f32 %v1275, %v1279
        %1281 = vrot.lane.b32.xlu0 %v1175, 56
        %v1282 = vpop.permute.xlu0 %1281
        %v1285 = vsel %vm342, %v1280, 0
        %1287 = vmatpush.msra.mxu0 0.0
        %1288 = vmatpush.msra.mxu0 0.0
        %1289 = vmatpush.msra.mxu0 0.0
        %1290 = vmatpush.msra.mxu0 0.0
        %1291 = vmatpush.msra.mxu0 0.0
        %1292 = vmatpush.msra.mxu0 0.0
        %1293 = vmatpush.msra.mxu0 0.0
        %1294 = vmatpush.msra.mxu0 0.0
        %1295 = vmatpush.msra.mxu0 0.0
        %1296 = vmatpush.msra.mxu0 0.0
        %1297 = vmatpush.msra.mxu0 0.0
        %1298 = vmatpush.msra.mxu0 0.0
        %1299 = vmatpush.msra.mxu0 0.0
        %1300 = vmatpush.msra.mxu0 0.0
        %1301 = vmatpush.msra.mxu0 0.0
        %1302 = vmatpush.msra.mxu0 %v1282
        %1303 = vmatmul.f32.gmra.mxu0 %v1285
        %v1304 = vpop.f32.mrf.mxu0
        %v1305 = vadd.f32 0.0, %v1304
        %1306 = vdwg.mxu0
        %1307 = vrot.lane.b32.xlu0 %v1175, 112
        %v1308 = vpop.permute.xlu0 %1307
        %1309 = vrot.lane.b32.xlu0 %v1175, 80
        %v1310 = vpop.permute.xlu0 %1309
        %v1311 = vsel %vm342, %v1308, 0
        %v1313 = vsel %vm342, %v1310, 0
        %1315 = vmatpush.xpose.msra.mxu0 0.0
        %1316 = vmatpush.xpose.msra.mxu0 0.0
        %1317 = vmatpush.xpose.msra.mxu0 0.0
        %1318 = vmatpush.xpose.msra.mxu0 0.0
        %1319 = vmatpush.xpose.msra.mxu0 0.0
        %1320 = vmatpush.xpose.msra.mxu0 0.0
        %1321 = vmatpush.xpose.msra.mxu0 0.0
        %1322 = vmatpush.xpose.msra.mxu0 0.0
        %1323 = vmatpush.xpose.msra.mxu0 0.0
        %1324 = vmatpush.xpose.msra.mxu0 0.0
        %1325 = vmatpush.xpose.msra.mxu0 0.0
        %1326 = vmatpush.xpose.msra.mxu0 0.0
        %1327 = vmatpush.xpose.msra.mxu0 0.0
        %1328 = vmatpush.xpose.msra.mxu0 0.0
        %1329 = vmatpush.xpose.msra.mxu0 0.0
        %1330 = vmatpush.xpose.msra.mxu0 %v1313
        %1331 = vmatmul.f32.gmra.mxu0 %v1311
        %v1332 = vpop.f32.mrf.mxu0
        %v1333 = vadd.f32 0.0, %v1332
        %1334 = vdwg.mxu0
        %v1335 = vsel %vm342, %v1333, -inf
        %1336 = vmax.xlane.f32.xlu0 %v1335
        %v1337 = vpop.xlane.xlu0 %1336
        %v1338 = vsub.f32 %v1333, %v1337
        %v1339 = vmul.f32 %v1338, 1.442695
        %v1340 = vpow.pop %v1339
        %v1341 = vsel %vm342, %v1340, 0.0
        %1342 = vadd.xlane.f32.xlu0 %v1341
        %v1343 = vpop.xlane.xlu0 %1342
        %v1344 = vrcp.pop %v1343
        %v1345 = vmul.f32 %v1340, %v1344
        %1346 = vrot.lane.b32.xlu0 %v1175, 48
        %v1347 = vpop.permute.xlu0 %1346
        %v1350 = vsel %vm342, %v1345, 0
        %1352 = vmatpush.msra.mxu0 0.0
        %1353 = vmatpush.msra.mxu0 0.0
        %1354 = vmatpush.msra.mxu0 0.0
        %1355 = vmatpush.msra.mxu0 0.0
        %1356 = vmatpush.msra.mxu0 0.0
        %1357 = vmatpush.msra.mxu0 0.0
        %1358 = vmatpush.msra.mxu0 0.0
        %1359 = vmatpush.msra.mxu0 0.0
        %1360 = vmatpush.msra.mxu0 0.0
        %1361 = vmatpush.msra.mxu0 0.0
        %1362 = vmatpush.msra.mxu0 0.0
        %1363 = vmatpush.msra.mxu0 0.0
        %1364 = vmatpush.msra.mxu0 0.0
        %1365 = vmatpush.msra.mxu0 0.0
        %1366 = vmatpush.msra.mxu0 0.0
        %1367 = vmatpush.msra.mxu0 %v1347
        %1368 = vmatmul.f32.gmra.mxu0 %v1350
        %v1369 = vpop.f32.mrf.mxu0
        %v1370 = vadd.f32 0.0, %v1369
        %1371 = vdwg.mxu0
        %1372 = vrot.lane.b32.xlu0 %v1175, 104
        %v1373 = vpop.permute.xlu0 %1372
        %1374 = vrot.lane.b32.xlu0 %v1175, 72
        %v1375 = vpop.permute.xlu0 %1374
        %v1376 = vsel %vm342, %v1373, 0
        %v1378 = vsel %vm342, %v1375, 0
        %1380 = vmatpush.xpose.msra.mxu0 0.0
        %1381 = vmatpush.xpose.msra.mxu0 0.0
        %1382 = vmatpush.xpose.msra.mxu0 0.0
        %1383 = vmatpush.xpose.msra.mxu0 0.0
        %1384 = vmatpush.xpose.msra.mxu0 0.0
        %1385 = vmatpush.xpose.msra.mxu0 0.0
        %1386 = vmatpush.xpose.msra.mxu0 0.0
        %1387 = vmatpush.xpose.msra.mxu0 0.0
        %1388 = vmatpush.xpose.msra.mxu0 0.0
        %1389 = vmatpush.xpose.msra.mxu0 0.0
        %1390 = vmatpush.xpose.msra.mxu0 0.0
        %1391 = vmatpush.xpose.msra.mxu0 0.0
        %1392 = vmatpush.xpose.msra.mxu0 0.0
        %1393 = vmatpush.xpose.msra.mxu0 0.0
        %1394 = vmatpush.xpose.msra.mxu0 0.0
        %1395 = vmatpush.xpose.msra.mxu0 %v1378
        %1396 = vmatmul.f32.gmra.mxu0 %v1376
        %v1397 = vpop.f32.mrf.mxu0
        %v1398 = vadd.f32 0.0, %v1397
        %1399 = vdwg.mxu0
        %v1400 = vsel %vm342, %v1398, -inf
        %1401 = vmax.xlane.f32.xlu0 %v1400
        %v1402 = vpop.xlane.xlu0 %1401
        %v1403 = vsub.f32 %v1398, %v1402
        %v1404 = vmul.f32 %v1403, 1.442695
        %v1405 = vpow.pop %v1404
        %v1406 = vsel %vm342, %v1405, 0.0
        %1407 = vadd.xlane.f32.xlu0 %v1406
        %v1408 = vpop.xlane.xlu0 %1407
        %v1409 = vrcp.pop %v1408
        %v1410 = vmul.f32 %v1405, %v1409
        %1411 = vrot.lane.b32.xlu0 %v1175, 40
        %v1412 = vpop.permute.xlu0 %1411
        %v1415 = vsel %vm342, %v1410, 0
        %1417 = vmatpush.msra.mxu0 0.0
        %1418 = vmatpush.msra.mxu0 0.0
        %1419 = vmatpush.msra.mxu0 0.0
        %1420 = vmatpush.msra.mxu0 0.0
        %1421 = vmatpush.msra.mxu0 0.0
        %1422 = vmatpush.msra.mxu0 0.0
        %1423 = vmatpush.msra.mxu0 0.0
        %1424 = vmatpush.msra.mxu0 0.0
        %1425 = vmatpush.msra.mxu0 0.0
        %1426 = vmatpush.msra.mxu0 0.0
        %1427 = vmatpush.msra.mxu0 0.0
        %1428 = vmatpush.msra.mxu0 0.0
        %1429 = vmatpush.msra.mxu0 0.0
        %1430 = vmatpush.msra.mxu0 0.0
        %1431 = vmatpush.msra.mxu0 0.0
        %1432 = vmatpush.msra.mxu0 %v1412
        %1433 = vmatmul.f32.gmra.mxu0 %v1415
        %v1434 = vpop.f32.mrf.mxu0
        %v1435 = vadd.f32 0.0, %v1434
        %1436 = vdwg.mxu0
        %1438 = vrot.lane.b32.xlu0 %v1305, 8
        %v1439 = vpop.permute.xlu0 %1438
        %1442 = vrot.lane.b32.xlu0 %v1370, 16
        %v1443 = vpop.permute.xlu0 %1442
        %1446 = vrot.lane.b32.xlu0 %v1435, 24
        %v1447 = vpop.permute.xlu0 %1446
        %v1449 = vsel %vm342, %v1240, %v1439
        %v1450 = vsel %vm612, %v1449, %v1443
        %v1451 = vsel %vm614, %v1450, %v1447
        %s1452 = scalar_lea.vmem %s3, 32
        %v1453 = vld [vmem:[%s1452] sm:$0xff]
        %v1454 = vld [vmem:[%s1452 + $0x8] sm:$0xff]
        %v1455 = vld [vmem:[%s1452 + $0x10] sm:$0xff]
        %v1456 = vld [vmem:[%s1452 + $0x18] sm:$0xff]
        %s1457 = scalar_lea.vmem %s7, 8
        %v1458 = vld [vmem:[%s1457] sm:$0x1]
        %v1459 = vperm.slane %v1458, 0
        %v1461 = vsel %vm322, %v1451, 0
        %1463 = vmatpush.msra.mxu0 0.0
        %1464 = vmatpush.msra.mxu0 0.0
        %1465 = vmatpush.msra.mxu0 0.0
        %1466 = vmatpush.msra.mxu0 0.0
        %1467 = vmatpush.msra.mxu0 0.0
        %1468 = vmatpush.msra.mxu0 0.0
        %1469 = vmatpush.msra.mxu0 0.0
        %1470 = vmatpush.msra.mxu0 0.0
        %1471 = vmatpush.msra.mxu0 0.0
        %1472 = vmatpush.msra.mxu0 0.0
        %1473 = vmatpush.msra.mxu0 0.0
        %1474 = vmatpush.msra.mxu0 0.0
        %1475 = vmatpush.msra.mxu0 %v1456
        %1476 = vmatpush.msra.mxu0 %v1455
        %1477 = vmatpush.msra.mxu0 %v1454
        %1478 = vmatpush.msra.mxu0 %v1453
        %1479 = vmatmul.f32.gmra.mxu0 %v1461
        %v1480 = vpop.f32.mrf.mxu0
        %v1481 = vadd.f32 %v1459, %v1480
        %1482 = vdwg.mxu0
        %v1483 = vadd.f32 %v1141, %v1481
        %v1484 = vld [vmem:[%s1457 + $0x1] sm:$0x1]
        %v1485 = vld [vmem:[%s1457 + $0x2] sm:$0x1]
        %v1486 = vsel %vm322, %v1483, 0.0
        %1487 = vadd.xlane.f32.xlu0 %v1486
        %v1488 = vpop.xlane.xlu0 %1487
        %v1489 = vmul.f32 %v1488, %v657
        %v1490 = vsub.f32 %v1483, %v1489
        %v1491 = vmul.f32 %v1490, %v1490
        %v1492 = vsel %vm322, %v1491, 0.0
        %1493 = vadd.xlane.f32.xlu0 %v1492
        %v1494 = vpop.xlane.xlu0 %1493
        %v1495 = vmul.f32 %v1494, %v657
        %v1496 = vadd.f32 %v1495, 1e-05
        %v1497 = vrsqrt.pop %v1496
        %v1498 = vmul.f32 %v1497, %v1496
        %v1499 = vmul.f32 %v1498, %v1497
        %v1500 = vmul.f32 0.5, %v1499
        %v1501 = vsub.f32 1.5, %v1500
        %v1502 = vmul.f32 %v1497, %v1501
        %vm1503 = vweird.f32 %v1496
        %vm1504 = vweird.f32 %v1497
        %vm1505 = vmor %vm1503, %vm1504
        %v1506 = vsel %vm1505, %v1497, %v1502
        %v1507 = vmul.f32 %v1490, %v1506
        %v1508 = vperm.slane %v1484, 0
        %v1509 = vmul.f32 %v1507, %v1508
        %v1510 = vperm.slane %v1485, 0
        %v1511 = vadd.f32 %v1509, %v1510
        %v1512 = vpack.c.bf16 %v1511, %v1511
        %s1513 = scalar_lea.vmem %s4, 64
        %v1514 = vld [vmem:[%s1513] sm:$0xff]
        %v1515 = vld [vmem:[%s1513 + $0x8] sm:$0xff]
        %v1516 = vld [vmem:[%s1513 + $0x10] sm:$0xff]
        %v1517 = vld [vmem:[%s1513 + $0x18] sm:$0xff]
        %v1518 = vld [vmem:[%s1513 + $0x20] sm:$0xff]
        %v1519 = vld [vmem:[%s1513 + $0x28] sm:$0xff]
        %v1520 = vld [vmem:[%s1513 + $0x30] sm:$0xff]
        %v1521 = vld [vmem:[%s1513 + $0x38] sm:$0xff]
        %s1522 = scalar_lea.vmem %s5, 1
        %v1523 = vld [vmem:[%s1522] ss:$2 sm:$0xf]
        %v1525 = vperm.slane %v1523, 0
        %v1526 = vperm.slane %v1523, 1
        %v1527 = vperm.slane %v1523, 2
        %v1528 = vperm.slane %v1523, 3
        %v1541 = vunpack.c.l.b16 %v1514
        %v1542 = vunpack.c.h.b16 %v1514
        %v1543 = vunpack.c.l.b16 %v1515
        %v1544 = vunpack.c.h.b16 %v1515
        %v1545 = vunpack.c.l.b16 %v1516
        %v1546 = vunpack.c.h.b16 %v1516
        %v1547 = vunpack.c.l.b16 %v1517
        %v1548 = vunpack.c.h.b16 %v1517
        %v1549 = vunpack.c.l.b16 %v1518
        %v1550 = vunpack.c.h.b16 %v1518
        %v1551 = vunpack.c.l.b16 %v1519
        %v1552 = vunpack.c.h.b16 %v1519
        %v1553 = vunpack.c.l.b16 %v1520
        %v1554 = vunpack.c.h.b16 %v1520
        %v1555 = vunpack.c.l.b16 %v1521
        %v1556 = vunpack.c.h.b16 %v1521
        %v1557 = vpack.c.b16 %v1545, %v1541
        %v1558 = vpack.c.b16 %v1546, %v1542
        %v1559 = vpack.c.b16 %v1547, %v1543
        %v1560 = vpack.c.b16 %v1548, %v1544
        %v1561 = vpack.c.b16 %v1553, %v1549
        %v1562 = vpack.c.b16 %v1554, %v1550
        %v1563 = vpack.c.b16 %v1555, %v1551
        %v1564 = vpack.c.b16 %v1556, %v1552
        %v1574 = vsel %vm322, %v1512, 0
        %1576 = vmatpush.bf16.msra.mxu0 0
        %1577 = vmatpush.bf16.msra.mxu0 0
        %1578 = vmatpush.bf16.msra.mxu0 0
        %1579 = vmatpush.bf16.msra.mxu0 0
        %1580 = vmatpush.bf16.msra.mxu0 0
        %1581 = vmatpush.bf16.msra.mxu0 0
        %1582 = vmatpush.bf16.msra.mxu0 %v1561
        %1583 = vmatpush.bf16.msra.mxu0 %v1557
        %1584 = vmatmul.bf16.gmra.mxu0 %v1574
        %v1585 = vpop.f32.mrf.mxu0
        %v1586 = vadd.f32 %v1525, %v1585
        %v1587 = vpop.f32.mrf.mxu0
        %1588 = vdwg.mxu0
        %1589 = vmatpush.bf16.msra.mxu0 0
        %1590 = vmatpush.bf16.msra.mxu0 0
        %1591 = vmatpush.bf16.msra.mxu0 0
        %1592 = vmatpush.bf16.msra.mxu0 0
        %1593 = vmatpush.bf16.msra.mxu0 0
        %1594 = vmatpush.bf16.msra.mxu0 0
        %1595 = vmatpush.bf16.msra.mxu0 %v1562
        %1596 = vmatpush.bf16.msra.mxu0 %v1558
        %1597 = vmatmul.bf16.gmra.mxu0 %v1574
        %v1598 = vpop.f32.mrf.mxu0
        %v1599 = vadd.f32 %v1526, %v1598
        %v1600 = vpop.f32.mrf.mxu0
        %1601 = vdwg.mxu0
        %1602 = vmatpush.bf16.msra.mxu0 0
        %1603 = vmatpush.bf16.msra.mxu0 0
        %1604 = vmatpush.bf16.msra.mxu0 0
        %1605 = vmatpush.bf16.msra.mxu0 0
        %1606 = vmatpush.bf16.msra.mxu0 0
        %1607 = vmatpush.bf16.msra.mxu0 0
        %1608 = vmatpush.bf16.msra.mxu0 %v1563
        %1609 = vmatpush.bf16.msra.mxu0 %v1559
        %1610 = vmatmul.bf16.gmra.mxu0 %v1574
        %v1611 = vpop.f32.mrf.mxu0
        %v1612 = vadd.f32 %v1527, %v1611
        %v1613 = vpop.f32.mrf.mxu0
        %1614 = vdwg.mxu0
        %1615 = vmatpush.bf16.msra.mxu0 0
        %1616 = vmatpush.bf16.msra.mxu0 0
        %1617 = vmatpush.bf16.msra.mxu0 0
        %1618 = vmatpush.bf16.msra.mxu0 0
        %1619 = vmatpush.bf16.msra.mxu0 0
        %1620 = vmatpush.bf16.msra.mxu0 0
        %1621 = vmatpush.bf16.msra.mxu0 %v1564
        %1622 = vmatpush.bf16.msra.mxu0 %v1560
        %1623 = vmatmul.bf16.gmra.mxu0 %v1574
        %v1624 = vpop.f32.mrf.mxu0
        %v1625 = vadd.f32 %v1528, %v1624
        %v1626 = vpop.f32.mrf.mxu0
        %1627 = vdwg.mxu0
        %v1628 = vmax.f32 %v1586, 0.0
        %v1629 = vmax.f32 %v1599, 0.0
        %v1630 = vmax.f32 %v1612, 0.0
        %v1631 = vmax.f32 %v1625, 0.0
        %v1632 = vpack.c.bf16 %v1628, %v1628
        %v1633 = vpack.c.bf16 %v1629, %v1629
        %v1634 = vpack.c.bf16 %v1630, %v1630
        %v1635 = vpack.c.bf16 %v1631, %v1631
        %s1636 = scalar_lea.vmem %s6, 256
        %v1637 = vld [vmem:[%s1636] sm:$0xf]
        %v1638 = vld [vmem:[%s1636 + $0x4] sm:$0xf]
        %v1639 = vld [vmem:[%s1636 + $0x8] sm:$0xf]
        %v1640 = vld [vmem:[%s1636 + $0xc] sm:$0xf]
        %v1641 = vld [vmem:[%s1636 + $0x10] sm:$0xf]
        %v1642 = vld [vmem:[%s1636 + $0x14] sm:$0xf]
        %v1643 = vld [vmem:[%s1636 + $0x18] sm:$0xf]
        %v1644 = vld [vmem:[%s1636 + $0x1c] sm:$0xf]
        %v1645 = vld [vmem:[%s1636 + $0x20] sm:$0xf]
        %v1646 = vld [vmem:[%s1636 + $0x24] sm:$0xf]
        %v1647 = vld [vmem:[%s1636 + $0x28] sm:$0xf]
        %v1648 = vld [vmem:[%s1636 + $0x2c] sm:$0xf]
        %v1649 = vld [vmem:[%s1636 + $0x30] sm:$0xf]
        %v1650 = vld [vmem:[%s1636 + $0x34] sm:$0xf]
        %v1651 = vld [vmem:[%s1636 + $0x38] sm:$0xf]
        %v1652 = vld [vmem:[%s1636 + $0x3c] sm:$0xf]
        %v1653 = vld [vmem:[%s1636 + $0x40] sm:$0xf]
        %v1654 = vld [vmem:[%s1636 + $0x44] sm:$0xf]
        %v1655 = vld [vmem:[%s1636 + $0x48] sm:$0xf]
        %v1656 = vld [vmem:[%s1636 + $0x4c] sm:$0xf]
        %v1657 = vld [vmem:[%s1636 + $0x50] sm:$0xf]
        %v1658 = vld [vmem:[%s1636 + $0x54] sm:$0xf]
        %v1659 = vld [vmem:[%s1636 + $0x58] sm:$0xf]
        %v1660 = vld [vmem:[%s1636 + $0x5c] sm:$0xf]
        %v1661 = vld [vmem:[%s1636 + $0x60] sm:$0xf]
        %v1662 = vld [vmem:[%s1636 + $0x64] sm:$0xf]
        %v1663 = vld [vmem:[%s1636 + $0x68] sm:$0xf]
        %v1664 = vld [vmem:[%s1636 + $0x6c] sm:$0xf]
        %v1665 = vld [vmem:[%s1636 + $0x70] sm:$0xf]
        %v1666 = vld [vmem:[%s1636 + $0x74] sm:$0xf]
        %v1667 = vld [vmem:[%s1636 + $0x78] sm:$0xf]
        %v1668 = vld [vmem:[%s1636 + $0x7c] sm:$0xf]
        %v1669 = vld [vmem:[%s1636 + $0x80] sm:$0xf]
        %v1670 = vld [vmem:[%s1636 + $0x84] sm:$0xf]
        %v1671 = vld [vmem:[%s1636 + $0x88] sm:$0xf]
        %v1672 = vld [vmem:[%s1636 + $0x8c] sm:$0xf]
        %v1673 = vld [vmem:[%s1636 + $0x90] sm:$0xf]
        %v1674 = vld [vmem:[%s1636 + $0x94] sm:$0xf]
        %v1675 = vld [vmem:[%s1636 + $0x98] sm:$0xf]
        %v1676 = vld [vmem:[%s1636 + $0x9c] sm:$0xf]
        %v1677 = vld [vmem:[%s1636 + $0xa0] sm:$0xf]
        %v1678 = vld [vmem:[%s1636 + $0xa4] sm:$0xf]
        %v1679 = vld [vmem:[%s1636 + $0xa8] sm:$0xf]
        %v1680 = vld [vmem:[%s1636 + $0xac] sm:$0xf]
        %v1681 = vld [vmem:[%s1636 + $0xb0] sm:$0xf]
        %v1682 = vld [vmem:[%s1636 + $0xb4] sm:$0xf]
        %v1683 = vld [vmem:[%s1636 + $0xb8] sm:$0xf]
        %v1684 = vld [vmem:[%s1636 + $0xbc] sm:$0xf]
        %v1685 = vld [vmem:[%s1636 + $0xc0] sm:$0xf]
        %v1686 = vld [vmem:[%s1636 + $0xc4] sm:$0xf]
        %v1687 = vld [vmem:[%s1636 + $0xc8] sm:$0xf]
        %v1688 = vld [vmem:[%s1636 + $0xcc] sm:$0xf]
        %v1689 = vld [vmem:[%s1636 + $0xd0] sm:$0xf]
        %v1690 = vld [vmem:[%s1636 + $0xd4] sm:$0xf]
        %v1691 = vld [vmem:[%s1636 + $0xd8] sm:$0xf]
        %v1692 = vld [vmem:[%s1636 + $0xdc] sm:$0xf]
        %v1693 = vld [vmem:[%s1636 + $0xe0] sm:$0xf]
        %v1694 = vld [vmem:[%s1636 + $0xe4] sm:$0xf]
        %v1695 = vld [vmem:[%s1636 + $0xe8] sm:$0xf]
        %v1696 = vld [vmem:[%s1636 + $0xec] sm:$0xf]
        %v1697 = vld [vmem:[%s1636 + $0xf0] sm:$0xf]
        %v1698 = vld [vmem:[%s1636 + $0xf4] sm:$0xf]
        %v1699 = vld [vmem:[%s1636 + $0xf8] sm:$0xf]
        %v1700 = vld [vmem:[%s1636 + $0xfc] sm:$0xf]
        %v1701 = vld [vmem:[%s1457 + $0x3] sm:$0x1]
        %v1702 = vperm.slane %v1701, 0
        %v1767 = vunpack.c.l.b16 %v1637
        %v1768 = vunpack.c.l.b16 %v1638
        %v1769 = vunpack.c.l.b16 %v1639
        %v1770 = vunpack.c.l.b16 %v1640
        %v1771 = vunpack.c.l.b16 %v1641
        %v1772 = vunpack.c.l.b16 %v1642
        %v1773 = vunpack.c.l.b16 %v1643
        %v1774 = vunpack.c.l.b16 %v1644
        %v1775 = vunpack.c.l.b16 %v1645
        %v1776 = vunpack.c.l.b16 %v1646
        %v1777 = vunpack.c.l.b16 %v1647
        %v1778 = vunpack.c.l.b16 %v1648
        %v1779 = vunpack.c.l.b16 %v1649
        %v1780 = vunpack.c.l.b16 %v1650
        %v1781 = vunpack.c.l.b16 %v1651
        %v1782 = vunpack.c.l.b16 %v1652
        %v1783 = vunpack.c.l.b16 %v1653
        %v1784 = vunpack.c.l.b16 %v1654
        %v1785 = vunpack.c.l.b16 %v1655
        %v1786 = vunpack.c.l.b16 %v1656
        %v1787 = vunpack.c.l.b16 %v1657
        %v1788 = vunpack.c.l.b16 %v1658
        %v1789 = vunpack.c.l.b16 %v1659
        %v1790 = vunpack.c.l.b16 %v1660
        %v1791 = vunpack.c.l.b16 %v1661
        %v1792 = vunpack.c.l.b16 %v1662
        %v1793 = vunpack.c.l.b16 %v1663
        %v1794 = vunpack.c.l.b16 %v1664
        %v1795 = vunpack.c.l.b16 %v1665
        %v1796 = vunpack.c.l.b16 %v1666
        %v1797 = vunpack.c.l.b16 %v1667
        %v1798 = vunpack.c.l.b16 %v1668
        %v1799 = vunpack.c.l.b16 %v1669
        %v1800 = vunpack.c.l.b16 %v1670
        %v1801 = vunpack.c.l.b16 %v1671
        %v1802 = vunpack.c.l.b16 %v1672
        %v1803 = vunpack.c.l.b16 %v1673
        %v1804 = vunpack.c.l.b16 %v1674
        %v1805 = vunpack.c.l.b16 %v1675
        %v1806 = vunpack.c.l.b16 %v1676
        %v1807 = vunpack.c.l.b16 %v1677
        %v1808 = vunpack.c.l.b16 %v1678
        %v1809 = vunpack.c.l.b16 %v1679
        %v1810 = vunpack.c.l.b16 %v1680
        %v1811 = vunpack.c.l.b16 %v1681
        %v1812 = vunpack.c.l.b16 %v1682
        %v1813 = vunpack.c.l.b16 %v1683
        %v1814 = vunpack.c.l.b16 %v1684
        %v1815 = vunpack.c.l.b16 %v1685
        %v1816 = vunpack.c.l.b16 %v1686
        %v1817 = vunpack.c.l.b16 %v1687
        %v1818 = vunpack.c.l.b16 %v1688
        %v1819 = vunpack.c.l.b16 %v1689
        %v1820 = vunpack.c.l.b16 %v1690
        %v1821 = vunpack.c.l.b16 %v1691
        %v1822 = vunpack.c.l.b16 %v1692
        %v1823 = vunpack.c.l.b16 %v1693
        %v1824 = vunpack.c.l.b16 %v1694
        %v1825 = vunpack.c.l.b16 %v1695
        %v1826 = vunpack.c.l.b16 %v1696
        %v1827 = vunpack.c.l.b16 %v1697
        %v1828 = vunpack.c.l.b16 %v1698
        %v1829 = vunpack.c.l.b16 %v1699
        %v1830 = vunpack.c.l.b16 %v1700
        %v1831 = vpack.c.b16 %v1768, %v1767
        %v1832 = vpack.c.b16 %v1770, %v1769
        %v1833 = vpack.c.b16 %v1772, %v1771
        %v1834 = vpack.c.b16 %v1774, %v1773
        %v1835 = vpack.c.b16 %v1776, %v1775
        %v1836 = vpack.c.b16 %v1778, %v1777
        %v1837 = vpack.c.b16 %v1780, %v1779
        %v1838 = vpack.c.b16 %v1782, %v1781
        %v1839 = vpack.c.b16 %v1784, %v1783
        %v1840 = vpack.c.b16 %v1786, %v1785
        %v1841 = vpack.c.b16 %v1788, %v1787
        %v1842 = vpack.c.b16 %v1790, %v1789
        %v1843 = vpack.c.b16 %v1792, %v1791
        %v1844 = vpack.c.b16 %v1794, %v1793
        %v1845 = vpack.c.b16 %v1796, %v1795
        %v1846 = vpack.c.b16 %v1798, %v1797
        %v1847 = vpack.c.b16 %v1800, %v1799
        %v1848 = vpack.c.b16 %v1802, %v1801
        %v1849 = vpack.c.b16 %v1804, %v1803
        %v1850 = vpack.c.b16 %v1806, %v1805
        %v1851 = vpack.c.b16 %v1808, %v1807
        %v1852 = vpack.c.b16 %v1810, %v1809
        %v1853 = vpack.c.b16 %v1812, %v1811
        %v1854 = vpack.c.b16 %v1814, %v1813
        %v1855 = vpack.c.b16 %v1816, %v1815
        %v1856 = vpack.c.b16 %v1818, %v1817
        %v1857 = vpack.c.b16 %v1820, %v1819
        %v1858 = vpack.c.b16 %v1822, %v1821
        %v1859 = vpack.c.b16 %v1824, %v1823
        %v1860 = vpack.c.b16 %v1826, %v1825
        %v1861 = vpack.c.b16 %v1828, %v1827
        %v1862 = vpack.c.b16 %v1830, %v1829
        %1895 = vmatpush.bf16.msra.mxu0 %v1838
        %1896 = vmatpush.bf16.msra.mxu0 %v1837
        %1897 = vmatpush.bf16.msra.mxu0 %v1836
        %1898 = vmatpush.bf16.msra.mxu0 %v1835
        %1899 = vmatpush.bf16.msra.mxu0 %v1834
        %1900 = vmatpush.bf16.msra.mxu0 %v1833
        %1901 = vmatpush.bf16.msra.mxu0 %v1832
        %1902 = vmatpush.bf16.msra.mxu0 %v1831
        %1903 = vmatmul.bf16.gmra.mxu0 %v1632
        %v1904 = vpop.f32.mrf.mxu0
        %v1905 = vadd.f32 %v1702, %v1904
        %v1906 = vpop.f32.mrf.mxu0
        %1907 = vdwg.mxu0
        %1908 = vmatpush.bf16.msra.mxu0 %v1846
        %1909 = vmatpush.bf16.msra.mxu0 %v1845
        %1910 = vmatpush.bf16.msra.mxu0 %v1844
        %1911 = vmatpush.bf16.msra.mxu0 %v1843
        %1912 = vmatpush.bf16.msra.mxu0 %v1842
        %1913 = vmatpush.bf16.msra.mxu0 %v1841
        %1914 = vmatpush.bf16.msra.mxu0 %v1840
        %1915 = vmatpush.bf16.msra.mxu0 %v1839
        %1916 = vmatmul.bf16.gmra.mxu0 %v1633
        %v1917 = vpop.f32.mrf.mxu0
        %v1918 = vadd.f32 %v1905, %v1917
        %v1919 = vpop.f32.mrf.mxu0
        %1920 = vdwg.mxu0
        %1921 = vmatpush.bf16.msra.mxu0 %v1854
        %1922 = vmatpush.bf16.msra.mxu0 %v1853
        %1923 = vmatpush.bf16.msra.mxu0 %v1852
        %1924 = vmatpush.bf16.msra.mxu0 %v1851
        %1925 = vmatpush.bf16.msra.mxu0 %v1850
        %1926 = vmatpush.bf16.msra.mxu0 %v1849
        %1927 = vmatpush.bf16.msra.mxu0 %v1848
        %1928 = vmatpush.bf16.msra.mxu0 %v1847
        %1929 = vmatmul.bf16.gmra.mxu0 %v1634
        %v1930 = vpop.f32.mrf.mxu0
        %v1931 = vadd.f32 %v1918, %v1930
        %v1932 = vpop.f32.mrf.mxu0
        %1933 = vdwg.mxu0
        %1934 = vmatpush.bf16.msra.mxu0 %v1862
        %1935 = vmatpush.bf16.msra.mxu0 %v1861
        %1936 = vmatpush.bf16.msra.mxu0 %v1860
        %1937 = vmatpush.bf16.msra.mxu0 %v1859
        %1938 = vmatpush.bf16.msra.mxu0 %v1858
        %1939 = vmatpush.bf16.msra.mxu0 %v1857
        %1940 = vmatpush.bf16.msra.mxu0 %v1856
        %1941 = vmatpush.bf16.msra.mxu0 %v1855
        %1942 = vmatmul.bf16.gmra.mxu0 %v1635
        %v1943 = vpop.f32.mrf.mxu0
        %v1944 = vadd.f32 %v1931, %v1943
        %v1945 = vpop.f32.mrf.mxu0
        %1946 = vdwg.mxu0
        %v1947 = vadd.f32 %v1511, %v1944
        %v1948 = vld [vmem:[%s1457 + $0x4] sm:$0x1]
        %v1949 = vld [vmem:[%s1457 + $0x5] sm:$0x1]
        %v1950 = vsel %vm322, %v1947, 0.0
        %1951 = vadd.xlane.f32.xlu0 %v1950
        %v1952 = vpop.xlane.xlu0 %1951
        %v1953 = vmul.f32 %v1952, %v657
        %v1954 = vsub.f32 %v1947, %v1953
        %v1955 = vmul.f32 %v1954, %v1954
        %v1956 = vsel %vm322, %v1955, 0.0
        %1957 = vadd.xlane.f32.xlu0 %v1956
        %v1958 = vpop.xlane.xlu0 %1957
        %v1959 = vmul.f32 %v1958, %v657
        %v1960 = vadd.f32 %v1959, 1e-05
        %v1961 = vrsqrt.pop %v1960
        %v1962 = vmul.f32 %v1961, %v1960
        %v1963 = vmul.f32 %v1962, %v1961
        %v1964 = vmul.f32 0.5, %v1963
        %v1965 = vsub.f32 1.5, %v1964
        %v1966 = vmul.f32 %v1961, %v1965
        %vm1967 = vweird.f32 %v1960
        %vm1968 = vweird.f32 %v1961
        %vm1969 = vmor %vm1967, %vm1968
        %v1970 = vsel %vm1969, %v1961, %v1966
        %v1971 = vmul.f32 %v1954, %v1970
        %v1972 = vperm.slane %v1948, 0
        %v1973 = vmul.f32 %v1971, %v1972
        %v1974 = vperm.slane %v1949, 0
        %v1975 = vadd.f32 %v1973, %v1974
        %1976 = vst.msk [vmem:[%s296] sm:$0xff] %vm322, %v1975
        %s1977 = sand.u32 %s203, 1
        %s1978 = scalar_lea.sflag [#allocation3], %s1977
        %s1979 = sand.u32 %s203, 1
        %s1980 = smul.addr %s1979, 8
        %s1981 = scalar_lea.vmem [#allocation2], %s1980
        // Predicated region
        $region53: #{vit_forward.1} parent=51 // pred_check
          %p1982 = pneg %p213
        $region54: #{vit_forward.1} parent=51 // pred_check_branch
          %1984 = sbr.rel (%p1982) target = $region56
        $region55: #{vit_forward.1} parent=51 // pred_region
          %1986 = vsyncadd %s1978, 0
          %s1987 = smul.addr %s22, 8
          %s1988 = scalar_lea.hbm %s8, %s1987
          %s1990 = sshll.u32 %s1981, 4
          %s1991 = int_to_ptr.vmem [resolvable:$true] %s1990
          %s1992 = sshll.u32 %s1988, 4
          %s1993 = int_to_ptr.hbm [resolvable:$true] %s1992
          %1995 = dma.vmem_to_hbm [thread:$0]  %s1991, 128, %s1993, %s1978
        $region56: #{vit_forward.1} parent=51 // pred_fallthru
          _
      $region52: #{vit_forward.1} parent=5 // pred_fallthru
        _
      %p1996 = scmp.le.s32.totalorder 2, %s17
      // Predicated region
      $region57: #{vit_forward.1} parent=5 // pred_check
        %p1997 = pneg %p1996
      $region58: #{vit_forward.1} parent=5 // pred_check_branch
        %1999 = sbr.rel (%p1997) target = $region60
      $region59: #{vit_forward.1} parent=5 // pred_region
        %s2000 = ssub.s32 %s17, 2
        // Predicated region
        $region61: #{vit_forward.1} parent=59 // pred_check
          %p2001 = pneg %p219
        $region62: #{vit_forward.1} parent=59 // pred_check_branch
          %2003 = sbr.rel (%p2001) target = $region64
        $region63: #{vit_forward.1} parent=59 // pred_region
          %s2004 = sand.u32 %s204, 1
          %s2005 = scalar_lea.sflag [#allocation3], %s2004
          %s2006 = sand.u32 %s204, 1
          %s2007 = smul.addr %s2006, 8
          %s2008 = scalar_lea.vmem [#allocation2], %s2007
          %2010 = dma.done %s2005, 128
        $region64: #{vit_forward.1} parent=59 // pred_fallthru
          _
      $region60: #{vit_forward.1} parent=5 // pred_fallthru
        _
    $region6: #{vit_forward.1} parent=1 // loop_footer
      %s21 = sadd.s32 1, %s17
    $region7: #{vit_forward.1} parent=1 // loop_footer_branch
      %16 = sbr.rel target = $region3
    $region8: #{vit_forward.1} parent=1 // loop_exit
      _
    %2011 = vsyncpa [#allocation3], 1
    %s2012 = scalar_lea.sflag [#allocation3], 1
    %2013 = vsyncpa %s2012, 1

</llo_original>
